<compile_context>
chip_gen: v7x
topology: tpu7x:2x2x1
jax: 0.10.0
libtpu: 0.0.40
codegen_flags: <defaults>
</compile_context>

<pallas_src>
import jax
import jax.numpy as jnp
from jax.experimental import pallas as pl
from jax.experimental.pallas import tpu as pltpu


def distogram_kernel(pair_ij_ref, pair_ji_ref, w_ref, b2_ref, out_ref):
    t, _, c = pair_ij_ref.shape
    nb = w_ref.shape[1]

    # Fused projection: one MXU matmul covers both the (i, j) and (j, i) tiles
    # (one weight push per grid step instead of two).  For c_z a multiple of
    # 128 the (t, t, c) -> (t*t, c) reshape is layout-preserving.
    x = jnp.concatenate(
        [pair_ij_ref[...].reshape(t * t, c),
         pair_ji_ref[...].reshape(t * t, c)],
        axis=0)                                                   # (2*t*t, c)
    h = jnp.dot(x, w_ref[...], preferred_element_type=jnp.float32)  # (2*t*t, nb)

    h_ij = h[: t * t].reshape(t, t, nb)
    h_ji = h[t * t:].reshape(t, t, nb)

    # logits[i, j, :] = half[i, j, :] + half[j, i, :]  (bias added once as 2*b).
    logits = h_ij + jnp.transpose(h_ji, (1, 0, 2)) + b2_ref[...]

    # Lane-dense store: (t, t*nb) slab, last dim a multiple of 128.
    out_ref[...] = logits.reshape(t, t * nb).astype(out_ref.dtype)


def distogram_head(pair, w, b, *, first_break, last_break, num_bins, tile=128):
    """pair: [N, N, C]; w: [C, num_bins]; b: [num_bins].

    Returns dict(logits=[N, N, num_bins], bin_edges=[num_bins - 1]).
    """
    n, n2, c = pair.shape
    assert n == n2
    nb = w.shape[1]
    assert nb == num_bins

    tile = min(tile, n)
    assert n % tile == 0 and tile % 8 == 0, "N_res must tile by a multiple of 8"

    # Bias appears twice after symmetrization -> fold it once as 2*b.
    b2 = (2.0 * b.astype(jnp.float32)).reshape(1, 1, nb)

    grid = (n // tile, n // tile)
    itemsize = jnp.dtype(pair.dtype).itemsize

    # Double-buffered working set: 2 pair tiles x 2 buffers + output slab x 2
    # buffers + resident params, plus headroom.  Clamp to [32 MiB, 64 MiB] so
    # it stays legal on v7x (64 MiB physical VMEM) while unblocking v5e/v6e
    # defaults.
    vmem_need = (2 * 2 * tile * tile * c * itemsize
                 + 2 * tile * tile * nb * itemsize
                 + (c * nb + nb) * 4
                 + (2 << 20))
    vmem_limit = int(min(max(vmem_need, 32 << 20), 64 << 20))

    flops = 2 * 2 * n * n * c * nb                       # two projections / output block
    bytes_accessed = 2 * n * n * c * itemsize + n * n * nb * itemsize

    logits2d = pl.pallas_call(
        distogram_kernel,
        out_shape=jax.ShapeDtypeStruct((n, n * nb), pair.dtype),
        grid_spec=pltpu.PrefetchScalarGridSpec(
            num_scalar_prefetch=0,
            grid=grid,
            in_specs=[
                # pair tile at (i, j)
                pl.BlockSpec((tile, tile, c), lambda i, j: (i, j, 0)),
                # same array, tile at (j, i) for symmetrization
                pl.BlockSpec((tile, tile, c), lambda i, j: (j, i, 0)),
                # full weight matrix, resident
                pl.BlockSpec((c, nb), lambda i, j: (0, 0)),
                # folded bias (2*b)
                pl.BlockSpec((1, 1, nb), lambda i, j: (0, 0, 0)),
            ],
            # lane-dense output: last dim tile*nb is a multiple of 128
            out_specs=pl.BlockSpec((tile, tile * nb), lambda i, j: (i, j)),
        ),
        compiler_params=pltpu.CompilerParams(
            dimension_semantics=("parallel", "parallel"),
            vmem_limit_bytes=vmem_limit),
        cost_estimate=pl.CostEstimate(
            flops=flops, transcendentals=0, bytes_accessed=bytes_accessed),
    )(pair, pair, w, b2)

    logits = logits2d.reshape(n, n, nb)
    bin_edges = jnp.linspace(first_break, last_break, num_bins - 1,
                             dtype=logits.dtype)
    return dict(logits=logits, bin_edges=bin_edges)


def distogram_head_ref(pair, w, b, *, first_break, last_break, num_bins):
    half = jnp.einsum("ijc,cb->ijb", pair, w) + b
    logits = half + jnp.swapaxes(half, -2, -3)
    bin_edges = jnp.linspace(first_break, last_break, num_bins - 1,
                             dtype=logits.dtype)
    return dict(logits=logits, bin_edges=bin_edges)


if __name__ == "__main__":
    # Small, module-consistent shapes: N_res=16, pair_dim=32, num_bins=64.
    N_RES = 16
    PAIR_DIM = 32
    NUM_BINS = 64
    FIRST_BREAK = 2.3125
    LAST_BREAK = 21.6875

    key = jax.random.PRNGKey(0)
    k_pair, k_w, k_b = jax.random.split(key, 3)

    pair = jax.random.normal(k_pair, (N_RES, N_RES, PAIR_DIM), dtype=jnp.float32)
    # Module default zero_init=True would yield all-zero logits; use a
    # 'linear'-style random init so the kernel is exercised meaningfully.
    w = jax.random.normal(k_w, (PAIR_DIM, NUM_BINS), dtype=jnp.float32) / jnp.sqrt(PAIR_DIM)
    b = jax.random.normal(k_b, (NUM_BINS,), dtype=jnp.float32) * 0.1

    out = distogram_head(pair, w, b,
                         first_break=FIRST_BREAK, last_break=LAST_BREAK,
                         num_bins=NUM_BINS, tile=128)
    jax.block_until_ready(out["logits"])
    jax.block_until_ready(out["bin_edges"])

    ref = distogram_head_ref(pair, w, b,
                             first_break=FIRST_BREAK, last_break=LAST_BREAK,
                             num_bins=NUM_BINS)

    assert out["logits"].shape == (N_RES, N_RES, NUM_BINS)
    assert out["bin_edges"].shape == (NUM_BINS - 1,)
    assert jnp.allclose(out["logits"], ref["logits"], atol=1e-4, rtol=1e-4)
    assert jnp.allclose(out["bin_edges"], ref["bin_edges"], atol=1e-6, rtol=1e-6)

    print("KERNEL_OK")
</pallas_src>

<mosaic_0001>
module attributes {stable_mosaic.version = 11 : i64} {
  func.func @distogram_kernel(%arg0: i32, %arg1: i32, %arg2: memref<16x16x32xf32, #tpu.memory_space<vmem>>, %arg3: memref<16x16x32xf32, #tpu.memory_space<vmem>>, %arg4: memref<32x64xf32, #tpu.memory_space<vmem>>, %arg5: memref<1x1x64xf32, #tpu.memory_space<vmem>>, %arg6: memref<16x1024xf32, #tpu.memory_space<vmem>>) attributes {dimension_semantics = [#tpu.dimension_semantics<parallel>, #tpu.dimension_semantics<parallel>], iteration_bounds = array<i64: 1, 1>, scalar_prefetch = 0 : i64, scratch_operands = 0 : i64, tpu.core_type = #tpu.core_type<tc>, window_params = [{transform_indices = @transform_0, window_bounds = array<i64: 16, 16, 32>}, {transform_indices = @transform_1, window_bounds = array<i64: 16, 16, 32>}, {pipeline_mode = #tpu.pipeline_mode<synchronous>, transform_indices = @transform_2, window_bounds = array<i64: 32, 64>}, {pipeline_mode = #tpu.pipeline_mode<synchronous>, transform_indices = @transform_3, window_bounds = array<i64: 1, 1, 64>}, {transform_indices = @transform_4, window_bounds = array<i64: 16, 1024>}]} {
    %c0 = arith.constant 0 : index
    %c0_0 = arith.constant 0 : index
    %c0_1 = arith.constant 0 : index
    %0 = vector.load %arg2[%c0, %c0_0, %c0_1] : memref<16x16x32xf32, #tpu.memory_space<vmem>>, vector<16x16x32xf32>
    %1 = vector.shape_cast %0 : vector<16x16x32xf32> to vector<256x32xf32>
    %c0_2 = arith.constant 0 : index
    %c0_3 = arith.constant 0 : index
    %c0_4 = arith.constant 0 : index
    %2 = vector.load %arg3[%c0_2, %c0_3, %c0_4] : memref<16x16x32xf32, #tpu.memory_space<vmem>>, vector<16x16x32xf32>
    %3 = vector.shape_cast %2 : vector<16x16x32xf32> to vector<256x32xf32>
    %4 = tpu.concatenate %1, %3 in 0 : vector<256x32xf32>, vector<256x32xf32> -> vector<512x32xf32>
    %c0_5 = arith.constant 0 : index
    %c0_6 = arith.constant 0 : index
    %5 = vector.load %arg4[%c0_5, %c0_6] : memref<32x64xf32, #tpu.memory_space<vmem>>, vector<32x64xf32>
    %cst = arith.constant dense<0.000000e+00> : vector<512x64xf32>
    %6 = tpu.matmul %4, %5, %cst {dimension_numbers = #tpu.dot_dimension_numbers<[1], [0], [0], [1], [0, 0, 1, 1], [], []>} : vector<512x32xf32>, vector<32x64xf32>, vector<512x64xf32> -> vector<512x64xf32>
    %7 = vector.extract_strided_slice %6 {offsets = [0, 0], sizes = [256, 64], strides = [1, 1]} : vector<512x64xf32> to vector<256x64xf32>
    %8 = vector.shape_cast %7 : vector<256x64xf32> to vector<16x16x64xf32>
    %9 = vector.extract_strided_slice %6 {offsets = [256, 0], sizes = [256, 64], strides = [1, 1]} : vector<512x64xf32> to vector<256x64xf32>
    %10 = vector.shape_cast %9 : vector<256x64xf32> to vector<16x16x64xf32>
    %11 = tpu.transpose %10, [1, 0, 2] : vector<16x16x64xf32> -> vector<16x16x64xf32>
    %12 = arith.addf %8, %11 : vector<16x16x64xf32>
    %c0_7 = arith.constant 0 : index
    %c0_8 = arith.constant 0 : index
    %c0_9 = arith.constant 0 : index
    %13 = vector.load %arg5[%c0_7, %c0_8, %c0_9] : memref<1x1x64xf32, #tpu.memory_space<vmem>>, vector<1x1x64xf32>
    %14 = vector.broadcast %13 : vector<1x1x64xf32> to vector<16x16x64xf32>
    %15 = arith.addf %12, %14 : vector<16x16x64xf32>
    %16 = vector.shape_cast %15 : vector<16x16x64xf32> to vector<16x1024xf32>
    %c0_10 = arith.constant 0 : index
    %c0_11 = arith.constant 0 : index
    %17 = vector.load %arg6[%c0_10, %c0_11] : memref<16x1024xf32, #tpu.memory_space<vmem>>, vector<16x1024xf32>
    tpu.vector_store %arg6[%c0_10, %c0_11], %16 {strides = array<i32>} : memref<16x1024xf32, #tpu.memory_space<vmem>>, vector<16x1024xf32>,
    return
  }
  func.func @transform_0(%arg0: i32, %arg1: i32) -> (i32, i32, i32) {
    %c0_i32 = arith.constant 0 : i32
    %c0_i32_0 = arith.constant 0 : i32
    return %arg0, %arg1, %c0_i32 : i32, i32, i32
  }
  func.func @transform_1(%arg0: i32, %arg1: i32) -> (i32, i32, i32) {
    %c0_i32 = arith.constant 0 : i32
    %c0_i32_0 = arith.constant 0 : i32
    return %arg1, %arg0, %c0_i32 : i32, i32, i32
  }
  func.func @transform_2(%arg0: i32, %arg1: i32) -> (i32, i32) {
    %c0_i32 = arith.constant 0 : i32
    %c0_i32_0 = arith.constant 0 : i32
    %c0_i32_1 = arith.constant 0 : i32
    return %c0_i32, %c0_i32_0 : i32, i32
  }
  func.func @transform_3(%arg0: i32, %arg1: i32) -> (i32, i32, i32) {
    %c0_i32 = arith.constant 0 : i32
    %c0_i32_0 = arith.constant 0 : i32
    %c0_i32_1 = arith.constant 0 : i32
    %c0_i32_2 = arith.constant 0 : i32
    return %c0_i32, %c0_i32_0, %c0_i32_1 : i32, i32, i32
  }
  func.func @transform_4(%arg0: i32, %arg1: i32) -> (i32, i32) {
    %c0_i32 = arith.constant 0 : i32
    return %arg0, %arg1 : i32, i32
  }
}

</mosaic_0001>

<llo_original>
// kernel: tpu_custom_call.1
$region0: #{tpu_custom_call.1}
  #allocation0 [shape = 'u32[]', space=smem, size = 0x4, offset = 0x4, fixed_abs, tag = 'smem constant byte address 0x4 - core index']
  #allocation1 [shape = 'u32[144,128]{1,0:T(1,128)}', space=vmem, size = 0x12000, scoped, tag = 'internal scratch']
  %s0 = inlined_call_operand.hbm [shape: f32[16,16,32], index: 0, kind: input, shape index: {}]
  %s1 = inlined_call_operand.hbm [shape: f32[16,16,32], index: 1, kind: input, shape index: {}]
  %s2 = inlined_call_operand.hbm [shape: f32[32,64], index: 2, kind: input, shape index: {}]
  %s3 = inlined_call_operand.vmem [shape: f32[1,1,64], index: 3, kind: input, shape index: {}]
  %s4 = inlined_call_operand.hbm [shape: f32[16,1024], index: 4, kind: output, shape index: {}]
  %s5 = sld [smem:[#allocation0]]
  $region38: #{tpu_custom_call.1} parent=0
    _
  %s7 = ssub.s32 1, %s5
  %s8 = scalar_select 0, %s7, %s5
  $region1: #{tpu_custom_call.1} parent=0
    #allocation2 [shape = 'u8[131072]{0}', space=vmem, size = 0x20000, scoped, tag = 'input window, operand 0, single buffered']
    #allocation3 [shape = 's32[1]{0}', space=sflag, size = 0x4, scoped, tag = 'scoped memory for tpu_custom_call.1']
    #allocation4 [shape = 's32[1]{0}', space=sflag, size = 0x4, scoped, tag = 'scoped memory for tpu_custom_call.1']
    #allocation5 [shape = 'u8[131072]{0}', space=vmem, size = 0x20000, scoped, tag = 'input window, operand 1, single buffered']
    #allocation6 [shape = 's32[1]{0}', space=sflag, size = 0x4, scoped, tag = 'scoped memory for tpu_custom_call.1']
    #allocation7 [shape = 'u8[16384]{0}', space=vmem, size = 0x4000, scoped, tag = 'input window, operand 2, single buffered']
    #allocation8 [shape = 'u8[65536]{0}', space=vmem, size = 0x10000, scoped, tag = 'output window, operand 0, single buffered']
    %9 = vsyncpa [#allocation3], 0
    %10 = vsyncpa [#allocation6], 0
    %11 = vsyncpa [#allocation4], 0
    // Predicated region
    $region2: #{tpu_custom_call.1} parent=1 // pred_check
      _
    $region3: #{tpu_custom_call.1} parent=1 // pred_check_branch
      %13 = sbr.rel (0) target = $region5
    $region4: #{tpu_custom_call.1} parent=1 // pred_region
      %s15 = ssub.s32 4096, 4096
      %16 = vsyncadd [#allocation3], %s15
      %s17 = sshll.u32 [#allocation2], 4
      %s18 = int_to_ptr.vmem [resolvable:$true] %s17
      %23 = dma.hbm_to_vmem [thread:$0]  %s0, 4096, %s18, [#allocation3], 128, 128, 8
    $region5: #{tpu_custom_call.1} parent=1 // pred_fallthru
      _
    // Predicated region
    $region6: #{tpu_custom_call.1} parent=1 // pred_check
      _
    $region7: #{tpu_custom_call.1} parent=1 // pred_check_branch
      %25 = sbr.rel (0) target = $region9
    $region8: #{tpu_custom_call.1} parent=1 // pred_region
      %s27 = ssub.s32 4096, 4096
      %28 = vsyncadd [#allocation6], %s27
      %s29 = sshll.u32 [#allocation5], 4
      %s30 = int_to_ptr.vmem [resolvable:$true] %s29
      %35 = dma.hbm_to_vmem [thread:$0]  %s1, 4096, %s30, [#allocation6], 128, 128, 8
    $region9: #{tpu_custom_call.1} parent=1 // pred_fallthru
      _
    // Predicated region
    $region10: #{tpu_custom_call.1} parent=1 // pred_check
      _
    $region11: #{tpu_custom_call.1} parent=1 // pred_check_branch
      %37 = sbr.rel (0) target = $region13
    $region12: #{tpu_custom_call.1} parent=1 // pred_region
      %s39 = ssub.s32 512, 512
      %40 = vsyncadd [#allocation6], %s39
      %s41 = sshll.u32 [#allocation7], 4
      %s42 = int_to_ptr.vmem [resolvable:$true] %s41
      %47 = dma.hbm_to_vmem [thread:$0]  %s2, 512, %s42, [#allocation6], 128, 128, 8
    $region13: #{tpu_custom_call.1} parent=1 // pred_fallthru
      _
    // Predicated region
    $region14: #{tpu_custom_call.1} parent=1 // pred_check
      _
    $region15: #{tpu_custom_call.1} parent=1 // pred_check_branch
      %49 = sbr.rel (0) target = $region17
    $region16: #{tpu_custom_call.1} parent=1 // pred_region
      _
    $region17: #{tpu_custom_call.1} parent=1 // pred_fallthru
      _
    // Predicated region
    $region18: #{tpu_custom_call.1} parent=1 // pred_check
      _
    $region19: #{tpu_custom_call.1} parent=1 // pred_check_branch
      %51 = sbr.rel (0) target = $region21
    $region20: #{tpu_custom_call.1} parent=1 // pred_region
      %52 = dma.done [#allocation3], 4096
    $region21: #{tpu_custom_call.1} parent=1 // pred_fallthru
      _
    // Predicated region
    $region22: #{tpu_custom_call.1} parent=1 // pred_check
      _
    $region23: #{tpu_custom_call.1} parent=1 // pred_check_branch
      %54 = sbr.rel (0) target = $region25
    $region24: #{tpu_custom_call.1} parent=1 // pred_region
      %55 = dma.done [#allocation6], 4096
    $region25: #{tpu_custom_call.1} parent=1 // pred_fallthru
      _
    // Predicated region
    $region26: #{tpu_custom_call.1} parent=1 // pred_check
      _
    $region27: #{tpu_custom_call.1} parent=1 // pred_check_branch
      %57 = sbr.rel (0) target = $region29
    $region28: #{tpu_custom_call.1} parent=1 // pred_region
      %58 = dma.done [#allocation6], 512
    $region29: #{tpu_custom_call.1} parent=1 // pred_fallthru
      _
    %v59 = vld [vmem:[#allocation2] sm:$0xff]
    %v60 = vld [vmem:[#allocation2 + $0x8] sm:$0xff]
    %v61 = vld [vmem:[#allocation2 + $0x10] sm:$0xff]
    %v62 = vld [vmem:[#allocation2 + $0x18] sm:$0xff]
    %v63 = vld [vmem:[#allocation2 + $0x20] sm:$0xff]
    %v64 = vld [vmem:[#allocation2 + $0x28] sm:$0xff]
    %v65 = vld [vmem:[#allocation2 + $0x30] sm:$0xff]
    %v66 = vld [vmem:[#allocation2 + $0x38] sm:$0xff]
    %v67 = vld [vmem:[#allocation2 + $0x40] sm:$0xff]
    %v68 = vld [vmem:[#allocation2 + $0x48] sm:$0xff]
    %v69 = vld [vmem:[#allocation2 + $0x50] sm:$0xff]
    %v70 = vld [vmem:[#allocation2 + $0x58] sm:$0xff]
    %v71 = vld [vmem:[#allocation2 + $0x60] sm:$0xff]
    %v72 = vld [vmem:[#allocation2 + $0x68] sm:$0xff]
    %v73 = vld [vmem:[#allocation2 + $0x70] sm:$0xff]
    %v74 = vld [vmem:[#allocation2 + $0x78] sm:$0xff]
    %v75 = vld [vmem:[#allocation2 + $0x80] sm:$0xff]
    %v76 = vld [vmem:[#allocation2 + $0x88] sm:$0xff]
    %v77 = vld [vmem:[#allocation2 + $0x90] sm:$0xff]
    %v78 = vld [vmem:[#allocation2 + $0x98] sm:$0xff]
    %v79 = vld [vmem:[#allocation2 + $0xa0] sm:$0xff]
    %v80 = vld [vmem:[#allocation2 + $0xa8] sm:$0xff]
    %v81 = vld [vmem:[#allocation2 + $0xb0] sm:$0xff]
    %v82 = vld [vmem:[#allocation2 + $0xb8] sm:$0xff]
    %v83 = vld [vmem:[#allocation2 + $0xc0] sm:$0xff]
    %v84 = vld [vmem:[#allocation2 + $0xc8] sm:$0xff]
    %v85 = vld [vmem:[#allocation2 + $0xd0] sm:$0xff]
    %v86 = vld [vmem:[#allocation2 + $0xd8] sm:$0xff]
    %v87 = vld [vmem:[#allocation2 + $0xe0] sm:$0xff]
    %v88 = vld [vmem:[#allocation2 + $0xe8] sm:$0xff]
    %v89 = vld [vmem:[#allocation2 + $0xf0] sm:$0xff]
    %v90 = vld [vmem:[#allocation2 + $0xf8] sm:$0xff]
    %v91 = vld [vmem:[#allocation5] sm:$0xff]
    %v92 = vld [vmem:[#allocation5 + $0x8] sm:$0xff]
    %v93 = vld [vmem:[#allocation5 + $0x10] sm:$0xff]
    %v94 = vld [vmem:[#allocation5 + $0x18] sm:$0xff]
    %v95 = vld [vmem:[#allocation5 + $0x20] sm:$0xff]
    %v96 = vld [vmem:[#allocation5 + $0x28] sm:$0xff]
    %v97 = vld [vmem:[#allocation5 + $0x30] sm:$0xff]
    %v98 = vld [vmem:[#allocation5 + $0x38] sm:$0xff]
    %v99 = vld [vmem:[#allocation5 + $0x40] sm:$0xff]
    %v100 = vld [vmem:[#allocation5 + $0x48] sm:$0xff]
    %v101 = vld [vmem:[#allocation5 + $0x50] sm:$0xff]
    %v102 = vld [vmem:[#allocation5 + $0x58] sm:$0xff]
    %v103 = vld [vmem:[#allocation5 + $0x60] sm:$0xff]
    %v104 = vld [vmem:[#allocation5 + $0x68] sm:$0xff]
    %v105 = vld [vmem:[#allocation5 + $0x70] sm:$0xff]
    %v106 = vld [vmem:[#allocation5 + $0x78] sm:$0xff]
    %v107 = vld [vmem:[#allocation5 + $0x80] sm:$0xff]
    %v108 = vld [vmem:[#allocation5 + $0x88] sm:$0xff]
    %v109 = vld [vmem:[#allocation5 + $0x90] sm:$0xff]
    %v110 = vld [vmem:[#allocation5 + $0x98] sm:$0xff]
    %v111 = vld [vmem:[#allocation5 + $0xa0] sm:$0xff]
    %v112 = vld [vmem:[#allocation5 + $0xa8] sm:$0xff]
    %v113 = vld [vmem:[#allocation5 + $0xb0] sm:$0xff]
    %v114 = vld [vmem:[#allocation5 + $0xb8] sm:$0xff]
    %v115 = vld [vmem:[#allocation5 + $0xc0] sm:$0xff]
    %v116 = vld [vmem:[#allocation5 + $0xc8] sm:$0xff]
    %v117 = vld [vmem:[#allocation5 + $0xd0] sm:$0xff]
    %v118 = vld [vmem:[#allocation5 + $0xd8] sm:$0xff]
    %v119 = vld [vmem:[#allocation5 + $0xe0] sm:$0xff]
    %v120 = vld [vmem:[#allocation5 + $0xe8] sm:$0xff]
    %v121 = vld [vmem:[#allocation5 + $0xf0] sm:$0xff]
    %v122 = vld [vmem:[#allocation5 + $0xf8] sm:$0xff]
    %v123 = vld [vmem:[#allocation7] sm:$0xff]
    %v124 = vld [vmem:[#allocation7 + $0x8] sm:$0xff]
    %v125 = vld [vmem:[#allocation7 + $0x10] sm:$0xff]
    %v126 = vld [vmem:[#allocation7 + $0x18] sm:$0xff]
    %vm127 = vcmask 261120
    %v129 = vsel %vm127, %v59, 0
    %v132 = vsel %vm127, %v60, 0
    %v135 = vsel %vm127, %v61, 0
    %v138 = vsel %vm127, %v62, 0
    %v141 = vsel %vm127, %v63, 0
    %v144 = vsel %vm127, %v64, 0
    %v147 = vsel %vm127, %v65, 0
    %v150 = vsel %vm127, %v66, 0
    %v153 = vsel %vm127, %v67, 0
    %v156 = vsel %vm127, %v68, 0
    %v159 = vsel %vm127, %v69, 0
    %v162 = vsel %vm127, %v70, 0
    %v165 = vsel %vm127, %v71, 0
    %v168 = vsel %vm127, %v72, 0
    %v171 = vsel %vm127, %v73, 0
    %v174 = vsel %vm127, %v74, 0
    %v177 = vsel %vm127, %v75, 0
    %v180 = vsel %vm127, %v76, 0
    %v183 = vsel %vm127, %v77, 0
    %v186 = vsel %vm127, %v78, 0
    %v189 = vsel %vm127, %v79, 0
    %v192 = vsel %vm127, %v80, 0
    %v195 = vsel %vm127, %v81, 0
    %v198 = vsel %vm127, %v82, 0
    %v201 = vsel %vm127, %v83, 0
    %v204 = vsel %vm127, %v84, 0
    %v207 = vsel %vm127, %v85, 0
    %v210 = vsel %vm127, %v86, 0
    %v213 = vsel %vm127, %v87, 0
    %v216 = vsel %vm127, %v88, 0
    %v219 = vsel %vm127, %v89, 0
    %v222 = vsel %vm127, %v90, 0
    %v225 = vsel %vm127, %v91, 0
    %v228 = vsel %vm127, %v92, 0
    %v231 = vsel %vm127, %v93, 0
    %v234 = vsel %vm127, %v94, 0
    %v237 = vsel %vm127, %v95, 0
    %v240 = vsel %vm127, %v96, 0
    %v243 = vsel %vm127, %v97, 0
    %v246 = vsel %vm127, %v98, 0
    %v249 = vsel %vm127, %v99, 0
    %v252 = vsel %vm127, %v100, 0
    %v255 = vsel %vm127, %v101, 0
    %v258 = vsel %vm127, %v102, 0
    %v261 = vsel %vm127, %v103, 0
    %v264 = vsel %vm127, %v104, 0
    %v267 = vsel %vm127, %v105, 0
    %v270 = vsel %vm127, %v106, 0
    %v273 = vsel %vm127, %v107, 0
    %v276 = vsel %vm127, %v108, 0
    %v279 = vsel %vm127, %v109, 0
    %v282 = vsel %vm127, %v110, 0
    %v285 = vsel %vm127, %v111, 0
    %v288 = vsel %vm127, %v112, 0
    %v291 = vsel %vm127, %v113, 0
    %v294 = vsel %vm127, %v114, 0
    %v297 = vsel %vm127, %v115, 0
    %v300 = vsel %vm127, %v116, 0
    %v303 = vsel %vm127, %v117, 0
    %v306 = vsel %vm127, %v118, 0
    %v309 = vsel %vm127, %v119, 0
    %v312 = vsel %vm127, %v120, 0
    %v315 = vsel %vm127, %v121, 0
    %v318 = vsel %vm127, %v122, 0
    %320 = vmatprep.subr.mxu0 0.0
    %321 = vmatpush1.msra.mxu0 %v123
    %322 = vmatprep.subr.mxu0 0.0
    %323 = vmatpush1.msra.mxu0 %v124
    %324 = vmatprep.subr.mxu0 0.0
    %325 = vmatpush1.msra.mxu0 %v125
    %326 = vmatprep.subr.mxu0 0.0
    %327 = vmatpush1.msra.mxu0 %v126
    %328 = vmatprep.subr.mxu0 0.0
    %329 = vmatpush1.msra.mxu0 0.0
    %330 = vmatprep.subr.mxu0 0.0
    %331 = vmatpush1.msra.mxu0 0.0
    %332 = vmatprep.subr.mxu0 0.0
    %333 = vmatpush1.msra.mxu0 0.0
    %334 = vmatprep.subr.mxu0 0.0
    %335 = vmatpush1.msra.mxu0 0.0
    %336 = vmatprep.subr.mxu0 0.0
    %337 = vmatpush1.msra.mxu0 0.0
    %338 = vmatprep.subr.mxu0 0.0
    %339 = vmatpush1.msra.mxu0 0.0
    %340 = vmatprep.subr.mxu0 0.0
    %341 = vmatpush1.msra.mxu0 0.0
    %342 = vmatprep.subr.mxu0 0.0
    %343 = vmatpush1.msra.mxu0 0.0
    %344 = vmatprep.subr.mxu0 0.0
    %345 = vmatpush1.msra.mxu0 0.0
    %346 = vmatprep.subr.mxu0 0.0
    %347 = vmatpush1.msra.mxu0 0.0
    %348 = vmatprep.subr.mxu0 0.0
    %349 = vmatpush1.msra.mxu0 0.0
    %350 = vmatprep.subr.mxu0 0.0
    %351 = vmatpush1.msra.mxu0 0.0
    %352 = vmatprep.subr.mxu0 0.0
    %353 = vmatpush1.msra.mxu0 0.0
    %354 = vmatprep.subr.mxu0 0.0
    %355 = vmatpush1.msra.mxu0 0.0
    %356 = vmatprep.subr.mxu0 0.0
    %357 = vmatpush1.msra.mxu0 0.0
    %358 = vmatprep.subr.mxu0 0.0
    %359 = vmatpush1.msra.mxu0 0.0
    %360 = vmatprep.subr.mxu0 0.0
    %361 = vmatpush1.msra.mxu0 0.0
    %362 = vmatprep.subr.mxu0 0.0
    %363 = vmatpush1.msra.mxu0 0.0
    %364 = vmatprep.subr.mxu0 0.0
    %365 = vmatpush1.msra.mxu0 0.0
    %366 = vmatprep.subr.mxu0 0.0
    %367 = vmatpush1.msra.mxu0 0.0
    %368 = vmatprep.subr.mxu0 0.0
    %369 = vmatpush1.msra.mxu0 0.0
    %370 = vmatprep.subr.mxu0 0.0
    %371 = vmatpush1.msra.mxu0 0.0
    %372 = vmatprep.subr.mxu0 0.0
    %373 = vmatpush1.msra.mxu0 0.0
    %374 = vmatprep.subr.mxu0 0.0
    %375 = vmatpush1.msra.mxu0 0.0
    %376 = vmatprep.subr.mxu0 0.0
    %377 = vmatpush1.msra.mxu0 0.0
    %378 = vmatprep.subr.mxu0 0.0
    %379 = vmatpush1.msra.mxu0 0.0
    %380 = vmatprep.subr.mxu0 0.0
    %381 = vmatpush1.msra.mxu0 0.0
    %382 = vmatprep.subr.mxu0 0.0
    %383 = vmatpush1.msra.mxu0 0.0
    %384 = vmatprep.mubr.f32.mxu0 0.0
    %385 = vmatmul.mubr.f32.gmra.mrb[0].mxu0 %v129
    %v386 = vpop.f32.mrb[0].mxu0
    %v387 = vadd.f32 0.0, %v386
    %v388 = vpop.f32.mrb[0].mxu0
    %389 = vmatprep.mubr.f32.mxu0 0.0
    %390 = vmatmul.mubr.f32.gmra.mrb[0].mxu0 %v132
    %v391 = vpop.f32.mrb[0].mxu0
    %v392 = vadd.f32 0.0, %v391
    %v393 = vpop.f32.mrb[0].mxu0
    %394 = vmatprep.mubr.f32.mxu0 0.0
    %395 = vmatmul.mubr.f32.gmra.mrb[0].mxu0 %v135
    %v396 = vpop.f32.mrb[0].mxu0
    %v397 = vadd.f32 0.0, %v396
    %v398 = vpop.f32.mrb[0].mxu0
    %399 = vmatprep.mubr.f32.mxu0 0.0
    %400 = vmatmul.mubr.f32.gmra.mrb[0].mxu0 %v138
    %v401 = vpop.f32.mrb[0].mxu0
    %v402 = vadd.f32 0.0, %v401
    %v403 = vpop.f32.mrb[0].mxu0
    %404 = vmatprep.mubr.f32.mxu0 0.0
    %405 = vmatmul.mubr.f32.gmra.mrb[0].mxu0 %v141
    %v406 = vpop.f32.mrb[0].mxu0
    %v407 = vadd.f32 0.0, %v406
    %v408 = vpop.f32.mrb[0].mxu0
    %409 = vmatprep.mubr.f32.mxu0 0.0
    %410 = vmatmul.mubr.f32.gmra.mrb[0].mxu0 %v144
    %v411 = vpop.f32.mrb[0].mxu0
    %v412 = vadd.f32 0.0, %v411
    %v413 = vpop.f32.mrb[0].mxu0
    %414 = vmatprep.mubr.f32.mxu0 0.0
    %415 = vmatmul.mubr.f32.gmra.mrb[0].mxu0 %v147
    %v416 = vpop.f32.mrb[0].mxu0
    %v417 = vadd.f32 0.0, %v416
    %v418 = vpop.f32.mrb[0].mxu0
    %419 = vmatprep.mubr.f32.mxu0 0.0
    %420 = vmatmul.mubr.f32.gmra.mrb[0].mxu0 %v150
    %v421 = vpop.f32.mrb[0].mxu0
    %v422 = vadd.f32 0.0, %v421
    %v423 = vpop.f32.mrb[0].mxu0
    %424 = vmatprep.mubr.f32.mxu0 0.0
    %425 = vmatmul.mubr.f32.gmra.mrb[0].mxu0 %v153
    %v426 = vpop.f32.mrb[0].mxu0
    %v427 = vadd.f32 0.0, %v426
    %v428 = vpop.f32.mrb[0].mxu0
    %429 = vmatprep.mubr.f32.mxu0 0.0
    %430 = vmatmul.mubr.f32.gmra.mrb[0].mxu0 %v156
    %v431 = vpop.f32.mrb[0].mxu0
    %v432 = vadd.f32 0.0, %v431
    %v433 = vpop.f32.mrb[0].mxu0
    %434 = vmatprep.mubr.f32.mxu0 0.0
    %435 = vmatmul.mubr.f32.gmra.mrb[0].mxu0 %v159
    %v436 = vpop.f32.mrb[0].mxu0
    %v437 = vadd.f32 0.0, %v436
    %v438 = vpop.f32.mrb[0].mxu0
    %439 = vmatprep.mubr.f32.mxu0 0.0
    %440 = vmatmul.mubr.f32.gmra.mrb[0].mxu0 %v162
    %v441 = vpop.f32.mrb[0].mxu0
    %v442 = vadd.f32 0.0, %v441
    %v443 = vpop.f32.mrb[0].mxu0
    %444 = vmatprep.mubr.f32.mxu0 0.0
    %445 = vmatmul.mubr.f32.gmra.mrb[0].mxu0 %v165
    %v446 = vpop.f32.mrb[0].mxu0
    %v447 = vadd.f32 0.0, %v446
    %v448 = vpop.f32.mrb[0].mxu0
    %449 = vmatprep.mubr.f32.mxu0 0.0
    %450 = vmatmul.mubr.f32.gmra.mrb[0].mxu0 %v168
    %v451 = vpop.f32.mrb[0].mxu0
    %v452 = vadd.f32 0.0, %v451
    %v453 = vpop.f32.mrb[0].mxu0
    %454 = vmatprep.mubr.f32.mxu0 0.0
    %455 = vmatmul.mubr.f32.gmra.mrb[0].mxu0 %v171
    %v456 = vpop.f32.mrb[0].mxu0
    %v457 = vadd.f32 0.0, %v456
    %v458 = vpop.f32.mrb[0].mxu0
    %459 = vmatprep.mubr.f32.mxu0 0.0
    %460 = vmatmul.mubr.f32.gmra.mrb[0].mxu0 %v174
    %v461 = vpop.f32.mrb[0].mxu0
    %v462 = vadd.f32 0.0, %v461
    %v463 = vpop.f32.mrb[0].mxu0
    %464 = vmatprep.mubr.f32.mxu0 0.0
    %465 = vmatmul.mubr.f32.gmra.mrb[0].mxu0 %v177
    %v466 = vpop.f32.mrb[0].mxu0
    %v467 = vadd.f32 0.0, %v466
    %v468 = vpop.f32.mrb[0].mxu0
    %469 = vmatprep.mubr.f32.mxu0 0.0
    %470 = vmatmul.mubr.f32.gmra.mrb[0].mxu0 %v180
    %v471 = vpop.f32.mrb[0].mxu0
    %v472 = vadd.f32 0.0, %v471
    %v473 = vpop.f32.mrb[0].mxu0
    %474 = vmatprep.mubr.f32.mxu0 0.0
    %475 = vmatmul.mubr.f32.gmra.mrb[0].mxu0 %v183
    %v476 = vpop.f32.mrb[0].mxu0
    %v477 = vadd.f32 0.0, %v476
    %v478 = vpop.f32.mrb[0].mxu0
    %479 = vmatprep.mubr.f32.mxu0 0.0
    %480 = vmatmul.mubr.f32.gmra.mrb[0].mxu0 %v186
    %v481 = vpop.f32.mrb[0].mxu0
    %v482 = vadd.f32 0.0, %v481
    %v483 = vpop.f32.mrb[0].mxu0
    %484 = vmatprep.mubr.f32.mxu0 0.0
    %485 = vmatmul.mubr.f32.gmra.mrb[0].mxu0 %v189
    %v486 = vpop.f32.mrb[0].mxu0
    %v487 = vadd.f32 0.0, %v486
    %v488 = vpop.f32.mrb[0].mxu0
    %489 = vmatprep.mubr.f32.mxu0 0.0
    %490 = vmatmul.mubr.f32.gmra.mrb[0].mxu0 %v192
    %v491 = vpop.f32.mrb[0].mxu0
    %v492 = vadd.f32 0.0, %v491
    %v493 = vpop.f32.mrb[0].mxu0
    %494 = vmatprep.mubr.f32.mxu0 0.0
    %495 = vmatmul.mubr.f32.gmra.mrb[0].mxu0 %v195
    %v496 = vpop.f32.mrb[0].mxu0
    %v497 = vadd.f32 0.0, %v496
    %v498 = vpop.f32.mrb[0].mxu0
    %499 = vmatprep.mubr.f32.mxu0 0.0
    %500 = vmatmul.mubr.f32.gmra.mrb[0].mxu0 %v198
    %v501 = vpop.f32.mrb[0].mxu0
    %v502 = vadd.f32 0.0, %v501
    %v503 = vpop.f32.mrb[0].mxu0
    %504 = vmatprep.mubr.f32.mxu0 0.0
    %505 = vmatmul.mubr.f32.gmra.mrb[0].mxu0 %v201
    %v506 = vpop.f32.mrb[0].mxu0
    %v507 = vadd.f32 0.0, %v506
    %v508 = vpop.f32.mrb[0].mxu0
    %509 = vmatprep.mubr.f32.mxu0 0.0
    %510 = vmatmul.mubr.f32.gmra.mrb[0].mxu0 %v204
    %v511 = vpop.f32.mrb[0].mxu0
    %v512 = vadd.f32 0.0, %v511
    %v513 = vpop.f32.mrb[0].mxu0
    %514 = vmatprep.mubr.f32.mxu0 0.0
    %515 = vmatmul.mubr.f32.gmra.mrb[0].mxu0 %v207
    %v516 = vpop.f32.mrb[0].mxu0
    %v517 = vadd.f32 0.0, %v516
    %v518 = vpop.f32.mrb[0].mxu0
    %519 = vmatprep.mubr.f32.mxu0 0.0
    %520 = vmatmul.mubr.f32.gmra.mrb[0].mxu0 %v210
    %v521 = vpop.f32.mrb[0].mxu0
    %v522 = vadd.f32 0.0, %v521
    %v523 = vpop.f32.mrb[0].mxu0
    %524 = vmatprep.mubr.f32.mxu0 0.0
    %525 = vmatmul.mubr.f32.gmra.mrb[0].mxu0 %v213
    %v526 = vpop.f32.mrb[0].mxu0
    %v527 = vadd.f32 0.0, %v526
    %v528 = vpop.f32.mrb[0].mxu0
    %529 = vmatprep.mubr.f32.mxu0 0.0
    %530 = vmatmul.mubr.f32.gmra.mrb[0].mxu0 %v216
    %v531 = vpop.f32.mrb[0].mxu0
    %v532 = vadd.f32 0.0, %v531
    %v533 = vpop.f32.mrb[0].mxu0
    %534 = vmatprep.mubr.f32.mxu0 0.0
    %535 = vmatmul.mubr.f32.gmra.mrb[0].mxu0 %v219
    %v536 = vpop.f32.mrb[0].mxu0
    %v537 = vadd.f32 0.0, %v536
    %v538 = vpop.f32.mrb[0].mxu0
    %539 = vmatprep.mubr.f32.mxu0 0.0
    %540 = vmatmul.mubr.f32.gmra.mrb[0].mxu0 %v222
    %v541 = vpop.f32.mrb[0].mxu0
    %v542 = vadd.f32 0.0, %v541
    %v543 = vpop.f32.mrb[0].mxu0
    %544 = vmatprep.mubr.f32.mxu0 0.0
    %545 = vmatmul.mubr.f32.gmra.mrb[0].mxu0 %v225
    %v546 = vpop.f32.mrb[0].mxu0
    %v547 = vadd.f32 0.0, %v546
    %v548 = vpop.f32.mrb[0].mxu0
    %549 = vmatprep.mubr.f32.mxu0 0.0
    %550 = vmatmul.mubr.f32.gmra.mrb[0].mxu0 %v228
    %v551 = vpop.f32.mrb[0].mxu0
    %v552 = vadd.f32 0.0, %v551
    %v553 = vpop.f32.mrb[0].mxu0
    %554 = vmatprep.mubr.f32.mxu0 0.0
    %555 = vmatmul.mubr.f32.gmra.mrb[0].mxu0 %v231
    %v556 = vpop.f32.mrb[0].mxu0
    %v557 = vadd.f32 0.0, %v556
    %v558 = vpop.f32.mrb[0].mxu0
    %559 = vmatprep.mubr.f32.mxu0 0.0
    %560 = vmatmul.mubr.f32.gmra.mrb[0].mxu0 %v234
    %v561 = vpop.f32.mrb[0].mxu0
    %v562 = vadd.f32 0.0, %v561
    %v563 = vpop.f32.mrb[0].mxu0
    %564 = vmatprep.mubr.f32.mxu0 0.0
    %565 = vmatmul.mubr.f32.gmra.mrb[0].mxu0 %v237
    %v566 = vpop.f32.mrb[0].mxu0
    %v567 = vadd.f32 0.0, %v566
    %v568 = vpop.f32.mrb[0].mxu0
    %569 = vmatprep.mubr.f32.mxu0 0.0
    %570 = vmatmul.mubr.f32.gmra.mrb[0].mxu0 %v240
    %v571 = vpop.f32.mrb[0].mxu0
    %v572 = vadd.f32 0.0, %v571
    %v573 = vpop.f32.mrb[0].mxu0
    %574 = vmatprep.mubr.f32.mxu0 0.0
    %575 = vmatmul.mubr.f32.gmra.mrb[0].mxu0 %v243
    %v576 = vpop.f32.mrb[0].mxu0
    %v577 = vadd.f32 0.0, %v576
    %v578 = vpop.f32.mrb[0].mxu0
    %579 = vmatprep.mubr.f32.mxu0 0.0
    %580 = vmatmul.mubr.f32.gmra.mrb[0].mxu0 %v246
    %v581 = vpop.f32.mrb[0].mxu0
    %v582 = vadd.f32 0.0, %v581
    %v583 = vpop.f32.mrb[0].mxu0
    %584 = vmatprep.mubr.f32.mxu0 0.0
    %585 = vmatmul.mubr.f32.gmra.mrb[0].mxu0 %v249
    %v586 = vpop.f32.mrb[0].mxu0
    %v587 = vadd.f32 0.0, %v586
    %v588 = vpop.f32.mrb[0].mxu0
    %589 = vmatprep.mubr.f32.mxu0 0.0
    %590 = vmatmul.mubr.f32.gmra.mrb[0].mxu0 %v252
    %v591 = vpop.f32.mrb[0].mxu0
    %v592 = vadd.f32 0.0, %v591
    %v593 = vpop.f32.mrb[0].mxu0
    %594 = vmatprep.mubr.f32.mxu0 0.0
    %595 = vmatmul.mubr.f32.gmra.mrb[0].mxu0 %v255
    %v596 = vpop.f32.mrb[0].mxu0
    %v597 = vadd.f32 0.0, %v596
    %v598 = vpop.f32.mrb[0].mxu0
    %599 = vmatprep.mubr.f32.mxu0 0.0
    %600 = vmatmul.mubr.f32.gmra.mrb[0].mxu0 %v258
    %v601 = vpop.f32.mrb[0].mxu0
    %v602 = vadd.f32 0.0, %v601
    %v603 = vpop.f32.mrb[0].mxu0
    %604 = vmatprep.mubr.f32.mxu0 0.0
    %605 = vmatmul.mubr.f32.gmra.mrb[0].mxu0 %v261
    %v606 = vpop.f32.mrb[0].mxu0
    %v607 = vadd.f32 0.0, %v606
    %v608 = vpop.f32.mrb[0].mxu0
    %609 = vmatprep.mubr.f32.mxu0 0.0
    %610 = vmatmul.mubr.f32.gmra.mrb[0].mxu0 %v264
    %v611 = vpop.f32.mrb[0].mxu0
    %v612 = vadd.f32 0.0, %v611
    %v613 = vpop.f32.mrb[0].mxu0
    %614 = vmatprep.mubr.f32.mxu0 0.0
    %615 = vmatmul.mubr.f32.gmra.mrb[0].mxu0 %v267
    %v616 = vpop.f32.mrb[0].mxu0
    %v617 = vadd.f32 0.0, %v616
    %v618 = vpop.f32.mrb[0].mxu0
    %619 = vmatprep.mubr.f32.mxu0 0.0
    %620 = vmatmul.mubr.f32.gmra.mrb[0].mxu0 %v270
    %v621 = vpop.f32.mrb[0].mxu0
    %v622 = vadd.f32 0.0, %v621
    %v623 = vpop.f32.mrb[0].mxu0
    %624 = vmatprep.mubr.f32.mxu0 0.0
    %625 = vmatmul.mubr.f32.gmra.mrb[0].mxu0 %v273
    %v626 = vpop.f32.mrb[0].mxu0
    %v627 = vadd.f32 0.0, %v626
    %v628 = vpop.f32.mrb[0].mxu0
    %629 = vmatprep.mubr.f32.mxu0 0.0
    %630 = vmatmul.mubr.f32.gmra.mrb[0].mxu0 %v276
    %v631 = vpop.f32.mrb[0].mxu0
    %v632 = vadd.f32 0.0, %v631
    %v633 = vpop.f32.mrb[0].mxu0
    %634 = vmatprep.mubr.f32.mxu0 0.0
    %635 = vmatmul.mubr.f32.gmra.mrb[0].mxu0 %v279
    %v636 = vpop.f32.mrb[0].mxu0
    %v637 = vadd.f32 0.0, %v636
    %v638 = vpop.f32.mrb[0].mxu0
    %639 = vmatprep.mubr.f32.mxu0 0.0
    %640 = vmatmul.mubr.f32.gmra.mrb[0].mxu0 %v282
    %v641 = vpop.f32.mrb[0].mxu0
    %v642 = vadd.f32 0.0, %v641
    %v643 = vpop.f32.mrb[0].mxu0
    %644 = vmatprep.mubr.f32.mxu0 0.0
    %645 = vmatmul.mubr.f32.gmra.mrb[0].mxu0 %v285
    %v646 = vpop.f32.mrb[0].mxu0
    %v647 = vadd.f32 0.0, %v646
    %v648 = vpop.f32.mrb[0].mxu0
    %649 = vmatprep.mubr.f32.mxu0 0.0
    %650 = vmatmul.mubr.f32.gmra.mrb[0].mxu0 %v288
    %v651 = vpop.f32.mrb[0].mxu0
    %v652 = vadd.f32 0.0, %v651
    %v653 = vpop.f32.mrb[0].mxu0
    %654 = vmatprep.mubr.f32.mxu0 0.0
    %655 = vmatmul.mubr.f32.gmra.mrb[0].mxu0 %v291
    %v656 = vpop.f32.mrb[0].mxu0
    %v657 = vadd.f32 0.0, %v656
    %v658 = vpop.f32.mrb[0].mxu0
    %659 = vmatprep.mubr.f32.mxu0 0.0
    %660 = vmatmul.mubr.f32.gmra.mrb[0].mxu0 %v294
    %v661 = vpop.f32.mrb[0].mxu0
    %v662 = vadd.f32 0.0, %v661
    %v663 = vpop.f32.mrb[0].mxu0
    %664 = vmatprep.mubr.f32.mxu0 0.0
    %665 = vmatmul.mubr.f32.gmra.mrb[0].mxu0 %v297
    %v666 = vpop.f32.mrb[0].mxu0
    %v667 = vadd.f32 0.0, %v666
    %v668 = vpop.f32.mrb[0].mxu0
    %669 = vmatprep.mubr.f32.mxu0 0.0
    %670 = vmatmul.mubr.f32.gmra.mrb[0].mxu0 %v300
    %v671 = vpop.f32.mrb[0].mxu0
    %v672 = vadd.f32 0.0, %v671
    %v673 = vpop.f32.mrb[0].mxu0
    %674 = vmatprep.mubr.f32.mxu0 0.0
    %675 = vmatmul.mubr.f32.gmra.mrb[0].mxu0 %v303
    %v676 = vpop.f32.mrb[0].mxu0
    %v677 = vadd.f32 0.0, %v676
    %v678 = vpop.f32.mrb[0].mxu0
    %679 = vmatprep.mubr.f32.mxu0 0.0
    %680 = vmatmul.mubr.f32.gmra.mrb[0].mxu0 %v306
    %v681 = vpop.f32.mrb[0].mxu0
    %v682 = vadd.f32 0.0, %v681
    %v683 = vpop.f32.mrb[0].mxu0
    %684 = vmatprep.mubr.f32.mxu0 0.0
    %685 = vmatmul.mubr.f32.gmra.mrb[0].mxu0 %v309
    %v686 = vpop.f32.mrb[0].mxu0
    %v687 = vadd.f32 0.0, %v686
    %v688 = vpop.f32.mrb[0].mxu0
    %689 = vmatprep.mubr.f32.mxu0 0.0
    %690 = vmatmul.mubr.f32.gmra.mrb[0].mxu0 %v312
    %v691 = vpop.f32.mrb[0].mxu0
    %v692 = vadd.f32 0.0, %v691
    %v693 = vpop.f32.mrb[0].mxu0
    %694 = vmatprep.mubr.f32.mxu0 0.0
    %695 = vmatmul.mubr.f32.gmra.mrb[0].mxu0 %v315
    %v696 = vpop.f32.mrb[0].mxu0
    %v697 = vadd.f32 0.0, %v696
    %v698 = vpop.f32.mrb[0].mxu0
    %699 = vmatprep.mubr.f32.mxu0 0.0
    %700 = vmatmul.mubr.f32.gmra.mrb[0].mxu0 %v318
    %v701 = vpop.f32.mrb[0].mxu0
    %v702 = vadd.f32 0.0, %v701
    %v703 = vpop.f32.mrb[0].mxu0
    %704 = vdwg.mxu0
    %v705 = vcombine.low %v547, %v567
    %v706 = vcombine.high %v547, %v567
    %v708 = vunpack.c.l.s4 1983009808
    %v709 = vunpack.c.0.s8 %v708
    %v710 = vlaneseq
    %v711 = vshrl.u32 %v710, 7
    %v712 = vsub.s32 %v709, %v711
    %v713 = vrot.slane %v705, %v712
    %v715 = vunpack.c.l.s4 1983009808
    %v716 = vunpack.c.0.s8 %v715
    %v717 = vlaneseq
    %v718 = vshrl.u32 %v717, 7
    %v719 = vsub.s32 %v716, %v718
    %v720 = vrot.slane %v706, %v719
    %v721 = vcombine.low %v557, %v577
    %v722 = vcombine.high %v557, %v577
    %v724 = vunpack.c.l.s4 1983009808
    %v725 = vunpack.c.0.s8 %v724
    %v726 = vlaneseq
    %v727 = vshrl.u32 %v726, 7
    %v728 = vsub.s32 %v725, %v727
    %v729 = vrot.slane %v721, %v728
    %v731 = vunpack.c.l.s4 1983009808
    %v732 = vunpack.c.0.s8 %v731
    %v733 = vlaneseq
    %v734 = vshrl.u32 %v733, 7
    %v735 = vsub.s32 %v732, %v734
    %v736 = vrot.slane %v722, %v735
    %v737 = vcombine.low %v587, %v607
    %v738 = vcombine.high %v587, %v607
    %v740 = vunpack.c.l.s4 1983009808
    %v741 = vunpack.c.0.s8 %v740
    %v742 = vlaneseq
    %v743 = vshrl.u32 %v742, 7
    %v744 = vsub.s32 %v741, %v743
    %v745 = vrot.slane %v737, %v744
    %v747 = vunpack.c.l.s4 1983009808
    %v748 = vunpack.c.0.s8 %v747
    %v749 = vlaneseq
    %v750 = vshrl.u32 %v749, 7
    %v751 = vsub.s32 %v748, %v750
    %v752 = vrot.slane %v738, %v751
    %v753 = vcombine.low %v597, %v617
    %v754 = vcombine.high %v597, %v617
    %v756 = vunpack.c.l.s4 1983009808
    %v757 = vunpack.c.0.s8 %v756
    %v758 = vlaneseq
    %v759 = vshrl.u32 %v758, 7
    %v760 = vsub.s32 %v757, %v759
    %v761 = vrot.slane %v753, %v760
    %v763 = vunpack.c.l.s4 1983009808
    %v764 = vunpack.c.0.s8 %v763
    %v765 = vlaneseq
    %v766 = vshrl.u32 %v765, 7
    %v767 = vsub.s32 %v764, %v766
    %v768 = vrot.slane %v754, %v767
    %v769 = vcombine.low %v713, %v729
    %v770 = vcombine.high %v713, %v729
    %v772 = vunpack.c.l.s4 1934713408
    %v773 = vunpack.c.0.s8 %v772
    %v774 = vlaneseq
    %v775 = vshrl.u32 %v774, 7
    %v776 = vsub.s32 %v773, %v775
    %v777 = vrot.slane %v769, %v776
    %v779 = vunpack.c.l.s4 1934713408
    %v780 = vunpack.c.0.s8 %v779
    %v781 = vlaneseq
    %v782 = vshrl.u32 %v781, 7
    %v783 = vsub.s32 %v780, %v782
    %v784 = vrot.slane %v770, %v783
    %v785 = vcombine.low %v720, %v736
    %v786 = vcombine.high %v720, %v736
    %v788 = vunpack.c.l.s4 1934713408
    %v789 = vunpack.c.0.s8 %v788
    %v790 = vlaneseq
    %v791 = vshrl.u32 %v790, 7
    %v792 = vsub.s32 %v789, %v791
    %v793 = vrot.slane %v785, %v792
    %v795 = vunpack.c.l.s4 1934713408
    %v796 = vunpack.c.0.s8 %v795
    %v797 = vlaneseq
    %v798 = vshrl.u32 %v797, 7
    %v799 = vsub.s32 %v796, %v798
    %v800 = vrot.slane %v786, %v799
    %v801 = vcombine.low %v745, %v761
    %v802 = vcombine.high %v745, %v761
    %v804 = vunpack.c.l.s4 1934713408
    %v805 = vunpack.c.0.s8 %v804
    %v806 = vlaneseq
    %v807 = vshrl.u32 %v806, 7
    %v808 = vsub.s32 %v805, %v807
    %v809 = vrot.slane %v801, %v808
    %v811 = vunpack.c.l.s4 1934713408
    %v812 = vunpack.c.0.s8 %v811
    %v813 = vlaneseq
    %v814 = vshrl.u32 %v813, 7
    %v815 = vsub.s32 %v812, %v814
    %v816 = vrot.slane %v802, %v815
    %v817 = vcombine.low %v752, %v768
    %v818 = vcombine.high %v752, %v768
    %v820 = vunpack.c.l.s4 1934713408
    %v821 = vunpack.c.0.s8 %v820
    %v822 = vlaneseq
    %v823 = vshrl.u32 %v822, 7
    %v824 = vsub.s32 %v821, %v823
    %v825 = vrot.slane %v817, %v824
    %v827 = vunpack.c.l.s4 1934713408
    %v828 = vunpack.c.0.s8 %v827
    %v829 = vlaneseq
    %v830 = vshrl.u32 %v829, 7
    %v831 = vsub.s32 %v828, %v830
    %v832 = vrot.slane %v818, %v831
    %v833 = vcombine.low %v777, %v809
    %v834 = vcombine.high %v777, %v809
    %v835 = vcombine.low %v784, %v816
    %v836 = vcombine.high %v784, %v816
    %v837 = vcombine.low %v793, %v825
    %v838 = vcombine.high %v793, %v825
    %v839 = vcombine.low %v800, %v832
    %v840 = vcombine.high %v800, %v832
    %v841 = vcombine.low %v627, %v647
    %v842 = vcombine.high %v627, %v647
    %v844 = vunpack.c.l.s4 1983009808
    %v845 = vunpack.c.0.s8 %v844
    %v846 = vlaneseq
    %v847 = vshrl.u32 %v846, 7
    %v848 = vsub.s32 %v845, %v847
    %v849 = vrot.slane %v841, %v848
    %v851 = vunpack.c.l.s4 1983009808
    %v852 = vunpack.c.0.s8 %v851
    %v853 = vlaneseq
    %v854 = vshrl.u32 %v853, 7
    %v855 = vsub.s32 %v852, %v854
    %v856 = vrot.slane %v842, %v855
    %v857 = vcombine.low %v637, %v657
    %v858 = vcombine.high %v637, %v657
    %v860 = vunpack.c.l.s4 1983009808
    %v861 = vunpack.c.0.s8 %v860
    %v862 = vlaneseq
    %v863 = vshrl.u32 %v862, 7
    %v864 = vsub.s32 %v861, %v863
    %v865 = vrot.slane %v857, %v864
    %v867 = vunpack.c.l.s4 1983009808
    %v868 = vunpack.c.0.s8 %v867
    %v869 = vlaneseq
    %v870 = vshrl.u32 %v869, 7
    %v871 = vsub.s32 %v868, %v870
    %v872 = vrot.slane %v858, %v871
    %v873 = vcombine.low %v667, %v687
    %v874 = vcombine.high %v667, %v687
    %v876 = vunpack.c.l.s4 1983009808
    %v877 = vunpack.c.0.s8 %v876
    %v878 = vlaneseq
    %v879 = vshrl.u32 %v878, 7
    %v880 = vsub.s32 %v877, %v879
    %v881 = vrot.slane %v873, %v880
    %v883 = vunpack.c.l.s4 1983009808
    %v884 = vunpack.c.0.s8 %v883
    %v885 = vlaneseq
    %v886 = vshrl.u32 %v885, 7
    %v887 = vsub.s32 %v884, %v886
    %v888 = vrot.slane %v874, %v887
    %v889 = vcombine.low %v677, %v697
    %v890 = vcombine.high %v677, %v697
    %v892 = vunpack.c.l.s4 1983009808
    %v893 = vunpack.c.0.s8 %v892
    %v894 = vlaneseq
    %v895 = vshrl.u32 %v894, 7
    %v896 = vsub.s32 %v893, %v895
    %v897 = vrot.slane %v889, %v896
    %v899 = vunpack.c.l.s4 1983009808
    %v900 = vunpack.c.0.s8 %v899
    %v901 = vlaneseq
    %v902 = vshrl.u32 %v901, 7
    %v903 = vsub.s32 %v900, %v902
    %v904 = vrot.slane %v890, %v903
    %v905 = vcombine.low %v849, %v865
    %v906 = vcombine.high %v849, %v865
    %v908 = vunpack.c.l.s4 1934713408
    %v909 = vunpack.c.0.s8 %v908
    %v910 = vlaneseq
    %v911 = vshrl.u32 %v910, 7
    %v912 = vsub.s32 %v909, %v911
    %v913 = vrot.slane %v905, %v912
    %v915 = vunpack.c.l.s4 1934713408
    %v916 = vunpack.c.0.s8 %v915
    %v917 = vlaneseq
    %v918 = vshrl.u32 %v917, 7
    %v919 = vsub.s32 %v916, %v918
    %v920 = vrot.slane %v906, %v919
    %v921 = vcombine.low %v856, %v872
    %v922 = vcombine.high %v856, %v872
    %v924 = vunpack.c.l.s4 1934713408
    %v925 = vunpack.c.0.s8 %v924
    %v926 = vlaneseq
    %v927 = vshrl.u32 %v926, 7
    %v928 = vsub.s32 %v925, %v927
    %v929 = vrot.slane %v921, %v928
    %v931 = vunpack.c.l.s4 1934713408
    %v932 = vunpack.c.0.s8 %v931
    %v933 = vlaneseq
    %v934 = vshrl.u32 %v933, 7
    %v935 = vsub.s32 %v932, %v934
    %v936 = vrot.slane %v922, %v935
    %v937 = vcombine.low %v881, %v897
    %v938 = vcombine.high %v881, %v897
    %v940 = vunpack.c.l.s4 1934713408
    %v941 = vunpack.c.0.s8 %v940
    %v942 = vlaneseq
    %v943 = vshrl.u32 %v942, 7
    %v944 = vsub.s32 %v941, %v943
    %v945 = vrot.slane %v937, %v944
    %v947 = vunpack.c.l.s4 1934713408
    %v948 = vunpack.c.0.s8 %v947
    %v949 = vlaneseq
    %v950 = vshrl.u32 %v949, 7
    %v951 = vsub.s32 %v948, %v950
    %v952 = vrot.slane %v938, %v951
    %v953 = vcombine.low %v888, %v904
    %v954 = vcombine.high %v888, %v904
    %v956 = vunpack.c.l.s4 1934713408
    %v957 = vunpack.c.0.s8 %v956
    %v958 = vlaneseq
    %v959 = vshrl.u32 %v958, 7
    %v960 = vsub.s32 %v957, %v959
    %v961 = vrot.slane %v953, %v960
    %v963 = vunpack.c.l.s4 1934713408
    %v964 = vunpack.c.0.s8 %v963
    %v965 = vlaneseq
    %v966 = vshrl.u32 %v965, 7
    %v967 = vsub.s32 %v964, %v966
    %v968 = vrot.slane %v954, %v967
    %v969 = vcombine.low %v913, %v945
    %v970 = vcombine.high %v913, %v945
    %v971 = vcombine.low %v920, %v952
    %v972 = vcombine.high %v920, %v952
    %v973 = vcombine.low %v929, %v961
    %v974 = vcombine.high %v929, %v961
    %v975 = vcombine.low %v936, %v968
    %v976 = vcombine.high %v936, %v968
    %v977 = vcombine.low %v552, %v572
    %v978 = vcombine.high %v552, %v572
    %v980 = vunpack.c.l.s4 1983009808
    %v981 = vunpack.c.0.s8 %v980
    %v982 = vlaneseq
    %v983 = vshrl.u32 %v982, 7
    %v984 = vsub.s32 %v981, %v983
    %v985 = vrot.slane %v977, %v984
    %v987 = vunpack.c.l.s4 1983009808
    %v988 = vunpack.c.0.s8 %v987
    %v989 = vlaneseq
    %v990 = vshrl.u32 %v989, 7
    %v991 = vsub.s32 %v988, %v990
    %v992 = vrot.slane %v978, %v991
    %v993 = vcombine.low %v562, %v582
    %v994 = vcombine.high %v562, %v582
    %v996 = vunpack.c.l.s4 1983009808
    %v997 = vunpack.c.0.s8 %v996
    %v998 = vlaneseq
    %v999 = vshrl.u32 %v998, 7
    %v1000 = vsub.s32 %v997, %v999
    %v1001 = vrot.slane %v993, %v1000
    %v1003 = vunpack.c.l.s4 1983009808
    %v1004 = vunpack.c.0.s8 %v1003
    %v1005 = vlaneseq
    %v1006 = vshrl.u32 %v1005, 7
    %v1007 = vsub.s32 %v1004, %v1006
    %v1008 = vrot.slane %v994, %v1007
    %v1009 = vcombine.low %v592, %v612
    %v1010 = vcombine.high %v592, %v612
    %v1012 = vunpack.c.l.s4 1983009808
    %v1013 = vunpack.c.0.s8 %v1012
    %v1014 = vlaneseq
    %v1015 = vshrl.u32 %v1014, 7
    %v1016 = vsub.s32 %v1013, %v1015
    %v1017 = vrot.slane %v1009, %v1016
    %v1019 = vunpack.c.l.s4 1983009808
    %v1020 = vunpack.c.0.s8 %v1019
    %v1021 = vlaneseq
    %v1022 = vshrl.u32 %v1021, 7
    %v1023 = vsub.s32 %v1020, %v1022
    %v1024 = vrot.slane %v1010, %v1023
    %v1025 = vcombine.low %v602, %v622
    %v1026 = vcombine.high %v602, %v622
    %v1028 = vunpack.c.l.s4 1983009808
    %v1029 = vunpack.c.0.s8 %v1028
    %v1030 = vlaneseq
    %v1031 = vshrl.u32 %v1030, 7
    %v1032 = vsub.s32 %v1029, %v1031
    %v1033 = vrot.slane %v1025, %v1032
    %v1035 = vunpack.c.l.s4 1983009808
    %v1036 = vunpack.c.0.s8 %v1035
    %v1037 = vlaneseq
    %v1038 = vshrl.u32 %v1037, 7
    %v1039 = vsub.s32 %v1036, %v1038
    %v1040 = vrot.slane %v1026, %v1039
    %v1041 = vcombine.low %v985, %v1001
    %v1042 = vcombine.high %v985, %v1001
    %v1044 = vunpack.c.l.s4 1934713408
    %v1045 = vunpack.c.0.s8 %v1044
    %v1046 = vlaneseq
    %v1047 = vshrl.u32 %v1046, 7
    %v1048 = vsub.s32 %v1045, %v1047
    %v1049 = vrot.slane %v1041, %v1048
    %v1051 = vunpack.c.l.s4 1934713408
    %v1052 = vunpack.c.0.s8 %v1051
    %v1053 = vlaneseq
    %v1054 = vshrl.u32 %v1053, 7
    %v1055 = vsub.s32 %v1052, %v1054
    %v1056 = vrot.slane %v1042, %v1055
    %v1057 = vcombine.low %v992, %v1008
    %v1058 = vcombine.high %v992, %v1008
    %v1060 = vunpack.c.l.s4 1934713408
    %v1061 = vunpack.c.0.s8 %v1060
    %v1062 = vlaneseq
    %v1063 = vshrl.u32 %v1062, 7
    %v1064 = vsub.s32 %v1061, %v1063
    %v1065 = vrot.slane %v1057, %v1064
    %v1067 = vunpack.c.l.s4 1934713408
    %v1068 = vunpack.c.0.s8 %v1067
    %v1069 = vlaneseq
    %v1070 = vshrl.u32 %v1069, 7
    %v1071 = vsub.s32 %v1068, %v1070
    %v1072 = vrot.slane %v1058, %v1071
    %v1073 = vcombine.low %v1017, %v1033
    %v1074 = vcombine.high %v1017, %v1033
    %v1076 = vunpack.c.l.s4 1934713408
    %v1077 = vunpack.c.0.s8 %v1076
    %v1078 = vlaneseq
    %v1079 = vshrl.u32 %v1078, 7
    %v1080 = vsub.s32 %v1077, %v1079
    %v1081 = vrot.slane %v1073, %v1080
    %v1083 = vunpack.c.l.s4 1934713408
    %v1084 = vunpack.c.0.s8 %v1083
    %v1085 = vlaneseq
    %v1086 = vshrl.u32 %v1085, 7
    %v1087 = vsub.s32 %v1084, %v1086
    %v1088 = vrot.slane %v1074, %v1087
    %v1089 = vcombine.low %v1024, %v1040
    %v1090 = vcombine.high %v1024, %v1040
    %v1092 = vunpack.c.l.s4 1934713408
    %v1093 = vunpack.c.0.s8 %v1092
    %v1094 = vlaneseq
    %v1095 = vshrl.u32 %v1094, 7
    %v1096 = vsub.s32 %v1093, %v1095
    %v1097 = vrot.slane %v1089, %v1096
    %v1099 = vunpack.c.l.s4 1934713408
    %v1100 = vunpack.c.0.s8 %v1099
    %v1101 = vlaneseq
    %v1102 = vshrl.u32 %v1101, 7
    %v1103 = vsub.s32 %v1100, %v1102
    %v1104 = vrot.slane %v1090, %v1103
    %v1105 = vcombine.low %v1049, %v1081
    %v1106 = vcombine.high %v1049, %v1081
    %v1107 = vcombine.low %v1056, %v1088
    %v1108 = vcombine.high %v1056, %v1088
    %v1109 = vcombine.low %v1065, %v1097
    %v1110 = vcombine.high %v1065, %v1097
    %v1111 = vcombine.low %v1072, %v1104
    %v1112 = vcombine.high %v1072, %v1104
    %v1113 = vcombine.low %v632, %v652
    %v1114 = vcombine.high %v632, %v652
    %v1116 = vunpack.c.l.s4 1983009808
    %v1117 = vunpack.c.0.s8 %v1116
    %v1118 = vlaneseq
    %v1119 = vshrl.u32 %v1118, 7
    %v1120 = vsub.s32 %v1117, %v1119
    %v1121 = vrot.slane %v1113, %v1120
    %v1123 = vunpack.c.l.s4 1983009808
    %v1124 = vunpack.c.0.s8 %v1123
    %v1125 = vlaneseq
    %v1126 = vshrl.u32 %v1125, 7
    %v1127 = vsub.s32 %v1124, %v1126
    %v1128 = vrot.slane %v1114, %v1127
    %v1129 = vcombine.low %v642, %v662
    %v1130 = vcombine.high %v642, %v662
    %v1132 = vunpack.c.l.s4 1983009808
    %v1133 = vunpack.c.0.s8 %v1132
    %v1134 = vlaneseq
    %v1135 = vshrl.u32 %v1134, 7
    %v1136 = vsub.s32 %v1133, %v1135
    %v1137 = vrot.slane %v1129, %v1136
    %v1139 = vunpack.c.l.s4 1983009808
    %v1140 = vunpack.c.0.s8 %v1139
    %v1141 = vlaneseq
    %v1142 = vshrl.u32 %v1141, 7
    %v1143 = vsub.s32 %v1140, %v1142
    %v1144 = vrot.slane %v1130, %v1143
    %v1145 = vcombine.low %v672, %v692
    %v1146 = vcombine.high %v672, %v692
    %v1148 = vunpack.c.l.s4 1983009808
    %v1149 = vunpack.c.0.s8 %v1148
    %v1150 = vlaneseq
    %v1151 = vshrl.u32 %v1150, 7
    %v1152 = vsub.s32 %v1149, %v1151
    %v1153 = vrot.slane %v1145, %v1152
    %v1155 = vunpack.c.l.s4 1983009808
    %v1156 = vunpack.c.0.s8 %v1155
    %v1157 = vlaneseq
    %v1158 = vshrl.u32 %v1157, 7
    %v1159 = vsub.s32 %v1156, %v1158
    %v1160 = vrot.slane %v1146, %v1159
    %v1161 = vcombine.low %v682, %v702
    %v1162 = vcombine.high %v682, %v702
    %v1164 = vunpack.c.l.s4 1983009808
    %v1165 = vunpack.c.0.s8 %v1164
    %v1166 = vlaneseq
    %v1167 = vshrl.u32 %v1166, 7
    %v1168 = vsub.s32 %v1165, %v1167
    %v1169 = vrot.slane %v1161, %v1168
    %v1171 = vunpack.c.l.s4 1983009808
    %v1172 = vunpack.c.0.s8 %v1171
    %v1173 = vlaneseq
    %v1174 = vshrl.u32 %v1173, 7
    %v1175 = vsub.s32 %v1172, %v1174
    %v1176 = vrot.slane %v1162, %v1175
    %v1177 = vcombine.low %v1121, %v1137
    %v1178 = vcombine.high %v1121, %v1137
    %v1180 = vunpack.c.l.s4 1934713408
    %v1181 = vunpack.c.0.s8 %v1180
    %v1182 = vlaneseq
    %v1183 = vshrl.u32 %v1182, 7
    %v1184 = vsub.s32 %v1181, %v1183
    %v1185 = vrot.slane %v1177, %v1184
    %v1187 = vunpack.c.l.s4 1934713408
    %v1188 = vunpack.c.0.s8 %v1187
    %v1189 = vlaneseq
    %v1190 = vshrl.u32 %v1189, 7
    %v1191 = vsub.s32 %v1188, %v1190
    %v1192 = vrot.slane %v1178, %v1191
    %v1193 = vcombine.low %v1128, %v1144
    %v1194 = vcombine.high %v1128, %v1144
    %v1196 = vunpack.c.l.s4 1934713408
    %v1197 = vunpack.c.0.s8 %v1196
    %v1198 = vlaneseq
    %v1199 = vshrl.u32 %v1198, 7
    %v1200 = vsub.s32 %v1197, %v1199
    %v1201 = vrot.slane %v1193, %v1200
    %v1203 = vunpack.c.l.s4 1934713408
    %v1204 = vunpack.c.0.s8 %v1203
    %v1205 = vlaneseq
    %v1206 = vshrl.u32 %v1205, 7
    %v1207 = vsub.s32 %v1204, %v1206
    %v1208 = vrot.slane %v1194, %v1207
    %v1209 = vcombine.low %v1153, %v1169
    %v1210 = vcombine.high %v1153, %v1169
    %v1212 = vunpack.c.l.s4 1934713408
    %v1213 = vunpack.c.0.s8 %v1212
    %v1214 = vlaneseq
    %v1215 = vshrl.u32 %v1214, 7
    %v1216 = vsub.s32 %v1213, %v1215
    %v1217 = vrot.slane %v1209, %v1216
    %v1219 = vunpack.c.l.s4 1934713408
    %v1220 = vunpack.c.0.s8 %v1219
    %v1221 = vlaneseq
    %v1222 = vshrl.u32 %v1221, 7
    %v1223 = vsub.s32 %v1220, %v1222
    %v1224 = vrot.slane %v1210, %v1223
    %v1225 = vcombine.low %v1160, %v1176
    %v1226 = vcombine.high %v1160, %v1176
    %v1228 = vunpack.c.l.s4 1934713408
    %v1229 = vunpack.c.0.s8 %v1228
    %v1230 = vlaneseq
    %v1231 = vshrl.u32 %v1230, 7
    %v1232 = vsub.s32 %v1229, %v1231
    %v1233 = vrot.slane %v1225, %v1232
    %v1235 = vunpack.c.l.s4 1934713408
    %v1236 = vunpack.c.0.s8 %v1235
    %v1237 = vlaneseq
    %v1238 = vshrl.u32 %v1237, 7
    %v1239 = vsub.s32 %v1236, %v1238
    %v1240 = vrot.slane %v1226, %v1239
    %v1241 = vcombine.low %v1185, %v1217
    %v1242 = vcombine.high %v1185, %v1217
    %v1243 = vcombine.low %v1192, %v1224
    %v1244 = vcombine.high %v1192, %v1224
    %v1245 = vcombine.low %v1201, %v1233
    %v1246 = vcombine.high %v1201, %v1233
    %v1247 = vcombine.low %v1208, %v1240
    %v1248 = vcombine.high %v1208, %v1240
    %v1249 = vadd.f32 %v387, %v833
    %v1250 = vadd.f32 %v392, %v969
    %v1251 = vadd.f32 %v397, %v834
    %v1252 = vadd.f32 %v402, %v970
    %v1253 = vadd.f32 %v407, %v835
    %v1254 = vadd.f32 %v412, %v971
    %v1255 = vadd.f32 %v417, %v836
    %v1256 = vadd.f32 %v422, %v972
    %v1257 = vadd.f32 %v427, %v837
    %v1258 = vadd.f32 %v432, %v973
    %v1259 = vadd.f32 %v437, %v838
    %v1260 = vadd.f32 %v442, %v974
    %v1261 = vadd.f32 %v447, %v839
    %v1262 = vadd.f32 %v452, %v975
    %v1263 = vadd.f32 %v457, %v840
    %v1264 = vadd.f32 %v462, %v976
    %v1265 = vadd.f32 %v467, %v1105
    %v1266 = vadd.f32 %v472, %v1241
    %v1267 = vadd.f32 %v477, %v1106
    %v1268 = vadd.f32 %v482, %v1242
    %v1269 = vadd.f32 %v487, %v1107
    %v1270 = vadd.f32 %v492, %v1243
    %v1271 = vadd.f32 %v497, %v1108
    %v1272 = vadd.f32 %v502, %v1244
    %v1273 = vadd.f32 %v507, %v1109
    %v1274 = vadd.f32 %v512, %v1245
    %v1275 = vadd.f32 %v517, %v1110
    %v1276 = vadd.f32 %v522, %v1246
    %v1277 = vadd.f32 %v527, %v1111
    %v1278 = vadd.f32 %v532, %v1247
    %v1279 = vadd.f32 %v537, %v1112
    %v1280 = vadd.f32 %v542, %v1248
    %v1281 = vld [vmem:[%s3] sm:$0x1]
    %v1283 = vlaneseq
    %v1284 = vshrl.u32 %v1283, 7
    %v1285 = vsub.s32 0, %v1284
    %v1286 = vrot.slane %v1281, %v1285
    %v1288 = vadd.f32 %v1249, %v1286
    %v1289 = vadd.f32 %v1250, %v1286
    %v1290 = vadd.f32 %v1251, %v1286
    %v1291 = vadd.f32 %v1252, %v1286
    %v1292 = vadd.f32 %v1253, %v1286
    %v1293 = vadd.f32 %v1254, %v1286
    %v1294 = vadd.f32 %v1255, %v1286
    %v1295 = vadd.f32 %v1256, %v1286
    %v1296 = vadd.f32 %v1257, %v1286
    %v1297 = vadd.f32 %v1258, %v1286
    %v1298 = vadd.f32 %v1259, %v1286
    %v1299 = vadd.f32 %v1260, %v1286
    %v1300 = vadd.f32 %v1261, %v1286
    %v1301 = vadd.f32 %v1262, %v1286
    %v1302 = vadd.f32 %v1263, %v1286
    %v1303 = vadd.f32 %v1264, %v1286
    %v1304 = vadd.f32 %v1265, %v1286
    %v1305 = vadd.f32 %v1266, %v1286
    %v1306 = vadd.f32 %v1267, %v1286
    %v1307 = vadd.f32 %v1268, %v1286
    %v1308 = vadd.f32 %v1269, %v1286
    %v1309 = vadd.f32 %v1270, %v1286
    %v1310 = vadd.f32 %v1271, %v1286
    %v1311 = vadd.f32 %v1272, %v1286
    %v1312 = vadd.f32 %v1273, %v1286
    %v1313 = vadd.f32 %v1274, %v1286
    %v1314 = vadd.f32 %v1275, %v1286
    %v1315 = vadd.f32 %v1276, %v1286
    %v1316 = vadd.f32 %v1277, %v1286
    %v1317 = vadd.f32 %v1278, %v1286
    %v1318 = vadd.f32 %v1279, %v1286
    %v1319 = vadd.f32 %v1280, %v1286
    %v1320 = vcombine.low %v1288, %v1292
    %v1321 = vcombine.high %v1288, %v1292
    %v1323 = vunpack.c.l.s4 1983009808
    %v1324 = vunpack.c.0.s8 %v1323
    %v1325 = vlaneseq
    %v1326 = vshrl.u32 %v1325, 7
    %v1327 = vsub.s32 %v1324, %v1326
    %v1328 = vrot.slane %v1320, %v1327
    %v1330 = vunpack.c.l.s4 1983009808
    %v1331 = vunpack.c.0.s8 %v1330
    %v1332 = vlaneseq
    %v1333 = vshrl.u32 %v1332, 7
    %v1334 = vsub.s32 %v1331, %v1333
    %v1335 = vrot.slane %v1321, %v1334
    %v1336 = vcombine.low %v1290, %v1294
    %v1337 = vcombine.high %v1290, %v1294
    %v1339 = vunpack.c.l.s4 1983009808
    %v1340 = vunpack.c.0.s8 %v1339
    %v1341 = vlaneseq
    %v1342 = vshrl.u32 %v1341, 7
    %v1343 = vsub.s32 %v1340, %v1342
    %v1344 = vrot.slane %v1336, %v1343
    %v1346 = vunpack.c.l.s4 1983009808
    %v1347 = vunpack.c.0.s8 %v1346
    %v1348 = vlaneseq
    %v1349 = vshrl.u32 %v1348, 7
    %v1350 = vsub.s32 %v1347, %v1349
    %v1351 = vrot.slane %v1337, %v1350
    %v1352 = vcombine.low %v1296, %v1300
    %v1353 = vcombine.high %v1296, %v1300
    %v1355 = vunpack.c.l.s4 1983009808
    %v1356 = vunpack.c.0.s8 %v1355
    %v1357 = vlaneseq
    %v1358 = vshrl.u32 %v1357, 7
    %v1359 = vsub.s32 %v1356, %v1358
    %v1360 = vrot.slane %v1352, %v1359
    %v1362 = vunpack.c.l.s4 1983009808
    %v1363 = vunpack.c.0.s8 %v1362
    %v1364 = vlaneseq
    %v1365 = vshrl.u32 %v1364, 7
    %v1366 = vsub.s32 %v1363, %v1365
    %v1367 = vrot.slane %v1353, %v1366
    %v1368 = vcombine.low %v1298, %v1302
    %v1369 = vcombine.high %v1298, %v1302
    %v1371 = vunpack.c.l.s4 1983009808
    %v1372 = vunpack.c.0.s8 %v1371
    %v1373 = vlaneseq
    %v1374 = vshrl.u32 %v1373, 7
    %v1375 = vsub.s32 %v1372, %v1374
    %v1376 = vrot.slane %v1368, %v1375
    %v1378 = vunpack.c.l.s4 1983009808
    %v1379 = vunpack.c.0.s8 %v1378
    %v1380 = vlaneseq
    %v1381 = vshrl.u32 %v1380, 7
    %v1382 = vsub.s32 %v1379, %v1381
    %v1383 = vrot.slane %v1369, %v1382
    %v1384 = vcombine.low %v1328, %v1344
    %v1385 = vcombine.high %v1328, %v1344
    %v1387 = vunpack.c.l.s4 1934713408
    %v1388 = vunpack.c.0.s8 %v1387
    %v1389 = vlaneseq
    %v1390 = vshrl.u32 %v1389, 7
    %v1391 = vsub.s32 %v1388, %v1390
    %v1392 = vrot.slane %v1384, %v1391
    %v1394 = vunpack.c.l.s4 1934713408
    %v1395 = vunpack.c.0.s8 %v1394
    %v1396 = vlaneseq
    %v1397 = vshrl.u32 %v1396, 7
    %v1398 = vsub.s32 %v1395, %v1397
    %v1399 = vrot.slane %v1385, %v1398
    %v1400 = vcombine.low %v1335, %v1351
    %v1401 = vcombine.high %v1335, %v1351
    %v1403 = vunpack.c.l.s4 1934713408
    %v1404 = vunpack.c.0.s8 %v1403
    %v1405 = vlaneseq
    %v1406 = vshrl.u32 %v1405, 7
    %v1407 = vsub.s32 %v1404, %v1406
    %v1408 = vrot.slane %v1400, %v1407
    %v1410 = vunpack.c.l.s4 1934713408
    %v1411 = vunpack.c.0.s8 %v1410
    %v1412 = vlaneseq
    %v1413 = vshrl.u32 %v1412, 7
    %v1414 = vsub.s32 %v1411, %v1413
    %v1415 = vrot.slane %v1401, %v1414
    %v1416 = vcombine.low %v1360, %v1376
    %v1417 = vcombine.high %v1360, %v1376
    %v1419 = vunpack.c.l.s4 1934713408
    %v1420 = vunpack.c.0.s8 %v1419
    %v1421 = vlaneseq
    %v1422 = vshrl.u32 %v1421, 7
    %v1423 = vsub.s32 %v1420, %v1422
    %v1424 = vrot.slane %v1416, %v1423
    %v1426 = vunpack.c.l.s4 1934713408
    %v1427 = vunpack.c.0.s8 %v1426
    %v1428 = vlaneseq
    %v1429 = vshrl.u32 %v1428, 7
    %v1430 = vsub.s32 %v1427, %v1429
    %v1431 = vrot.slane %v1417, %v1430
    %v1432 = vcombine.low %v1367, %v1383
    %v1433 = vcombine.high %v1367, %v1383
    %v1435 = vunpack.c.l.s4 1934713408
    %v1436 = vunpack.c.0.s8 %v1435
    %v1437 = vlaneseq
    %v1438 = vshrl.u32 %v1437, 7
    %v1439 = vsub.s32 %v1436, %v1438
    %v1440 = vrot.slane %v1432, %v1439
    %v1442 = vunpack.c.l.s4 1934713408
    %v1443 = vunpack.c.0.s8 %v1442
    %v1444 = vlaneseq
    %v1445 = vshrl.u32 %v1444, 7
    %v1446 = vsub.s32 %v1443, %v1445
    %v1447 = vrot.slane %v1433, %v1446
    %v1448 = vcombine.low %v1392, %v1424
    %v1449 = vcombine.high %v1392, %v1424
    %v1450 = vcombine.low %v1399, %v1431
    %v1451 = vcombine.high %v1399, %v1431
    %v1452 = vcombine.low %v1408, %v1440
    %v1453 = vcombine.high %v1408, %v1440
    %v1454 = vcombine.low %v1415, %v1447
    %v1455 = vcombine.high %v1415, %v1447
    %v1456 = vcombine.low %v1304, %v1308
    %v1457 = vcombine.high %v1304, %v1308
    %v1459 = vunpack.c.l.s4 1983009808
    %v1460 = vunpack.c.0.s8 %v1459
    %v1461 = vlaneseq
    %v1462 = vshrl.u32 %v1461, 7
    %v1463 = vsub.s32 %v1460, %v1462
    %v1464 = vrot.slane %v1456, %v1463
    %v1466 = vunpack.c.l.s4 1983009808
    %v1467 = vunpack.c.0.s8 %v1466
    %v1468 = vlaneseq
    %v1469 = vshrl.u32 %v1468, 7
    %v1470 = vsub.s32 %v1467, %v1469
    %v1471 = vrot.slane %v1457, %v1470
    %v1472 = vcombine.low %v1306, %v1310
    %v1473 = vcombine.high %v1306, %v1310
    %v1475 = vunpack.c.l.s4 1983009808
    %v1476 = vunpack.c.0.s8 %v1475
    %v1477 = vlaneseq
    %v1478 = vshrl.u32 %v1477, 7
    %v1479 = vsub.s32 %v1476, %v1478
    %v1480 = vrot.slane %v1472, %v1479
    %v1482 = vunpack.c.l.s4 1983009808
    %v1483 = vunpack.c.0.s8 %v1482
    %v1484 = vlaneseq
    %v1485 = vshrl.u32 %v1484, 7
    %v1486 = vsub.s32 %v1483, %v1485
    %v1487 = vrot.slane %v1473, %v1486
    %v1488 = vcombine.low %v1312, %v1316
    %v1489 = vcombine.high %v1312, %v1316
    %v1491 = vunpack.c.l.s4 1983009808
    %v1492 = vunpack.c.0.s8 %v1491
    %v1493 = vlaneseq
    %v1494 = vshrl.u32 %v1493, 7
    %v1495 = vsub.s32 %v1492, %v1494
    %v1496 = vrot.slane %v1488, %v1495
    %v1498 = vunpack.c.l.s4 1983009808
    %v1499 = vunpack.c.0.s8 %v1498
    %v1500 = vlaneseq
    %v1501 = vshrl.u32 %v1500, 7
    %v1502 = vsub.s32 %v1499, %v1501
    %v1503 = vrot.slane %v1489, %v1502
    %v1504 = vcombine.low %v1314, %v1318
    %v1505 = vcombine.high %v1314, %v1318
    %v1507 = vunpack.c.l.s4 1983009808
    %v1508 = vunpack.c.0.s8 %v1507
    %v1509 = vlaneseq
    %v1510 = vshrl.u32 %v1509, 7
    %v1511 = vsub.s32 %v1508, %v1510
    %v1512 = vrot.slane %v1504, %v1511
    %v1514 = vunpack.c.l.s4 1983009808
    %v1515 = vunpack.c.0.s8 %v1514
    %v1516 = vlaneseq
    %v1517 = vshrl.u32 %v1516, 7
    %v1518 = vsub.s32 %v1515, %v1517
    %v1519 = vrot.slane %v1505, %v1518
    %v1520 = vcombine.low %v1464, %v1480
    %v1521 = vcombine.high %v1464, %v1480
    %v1523 = vunpack.c.l.s4 1934713408
    %v1524 = vunpack.c.0.s8 %v1523
    %v1525 = vlaneseq
    %v1526 = vshrl.u32 %v1525, 7
    %v1527 = vsub.s32 %v1524, %v1526
    %v1528 = vrot.slane %v1520, %v1527
    %v1530 = vunpack.c.l.s4 1934713408
    %v1531 = vunpack.c.0.s8 %v1530
    %v1532 = vlaneseq
    %v1533 = vshrl.u32 %v1532, 7
    %v1534 = vsub.s32 %v1531, %v1533
    %v1535 = vrot.slane %v1521, %v1534
    %v1536 = vcombine.low %v1471, %v1487
    %v1537 = vcombine.high %v1471, %v1487
    %v1539 = vunpack.c.l.s4 1934713408
    %v1540 = vunpack.c.0.s8 %v1539
    %v1541 = vlaneseq
    %v1542 = vshrl.u32 %v1541, 7
    %v1543 = vsub.s32 %v1540, %v1542
    %v1544 = vrot.slane %v1536, %v1543
    %v1546 = vunpack.c.l.s4 1934713408
    %v1547 = vunpack.c.0.s8 %v1546
    %v1548 = vlaneseq
    %v1549 = vshrl.u32 %v1548, 7
    %v1550 = vsub.s32 %v1547, %v1549
    %v1551 = vrot.slane %v1537, %v1550
    %v1552 = vcombine.low %v1496, %v1512
    %v1553 = vcombine.high %v1496, %v1512
    %v1555 = vunpack.c.l.s4 1934713408
    %v1556 = vunpack.c.0.s8 %v1555
    %v1557 = vlaneseq
    %v1558 = vshrl.u32 %v1557, 7
    %v1559 = vsub.s32 %v1556, %v1558
    %v1560 = vrot.slane %v1552, %v1559
    %v1562 = vunpack.c.l.s4 1934713408
    %v1563 = vunpack.c.0.s8 %v1562
    %v1564 = vlaneseq
    %v1565 = vshrl.u32 %v1564, 7
    %v1566 = vsub.s32 %v1563, %v1565
    %v1567 = vrot.slane %v1553, %v1566
    %v1568 = vcombine.low %v1503, %v1519
    %v1569 = vcombine.high %v1503, %v1519
    %v1571 = vunpack.c.l.s4 1934713408
    %v1572 = vunpack.c.0.s8 %v1571
    %v1573 = vlaneseq
    %v1574 = vshrl.u32 %v1573, 7
    %v1575 = vsub.s32 %v1572, %v1574
    %v1576 = vrot.slane %v1568, %v1575
    %v1578 = vunpack.c.l.s4 1934713408
    %v1579 = vunpack.c.0.s8 %v1578
    %v1580 = vlaneseq
    %v1581 = vshrl.u32 %v1580, 7
    %v1582 = vsub.s32 %v1579, %v1581
    %v1583 = vrot.slane %v1569, %v1582
    %v1584 = vcombine.low %v1528, %v1560
    %v1585 = vcombine.high %v1528, %v1560
    %v1586 = vcombine.low %v1535, %v1567
    %v1587 = vcombine.high %v1535, %v1567
    %v1588 = vcombine.low %v1544, %v1576
    %v1589 = vcombine.high %v1544, %v1576
    %v1590 = vcombine.low %v1551, %v1583
    %v1591 = vcombine.high %v1551, %v1583
    %v1592 = vcombine.low %v1289, %v1293
    %v1593 = vcombine.high %v1289, %v1293
    %v1595 = vunpack.c.l.s4 1983009808
    %v1596 = vunpack.c.0.s8 %v1595
    %v1597 = vlaneseq
    %v1598 = vshrl.u32 %v1597, 7
    %v1599 = vsub.s32 %v1596, %v1598
    %v1600 = vrot.slane %v1592, %v1599
    %v1602 = vunpack.c.l.s4 1983009808
    %v1603 = vunpack.c.0.s8 %v1602
    %v1604 = vlaneseq
    %v1605 = vshrl.u32 %v1604, 7
    %v1606 = vsub.s32 %v1603, %v1605
    %v1607 = vrot.slane %v1593, %v1606
    %v1608 = vcombine.low %v1291, %v1295
    %v1609 = vcombine.high %v1291, %v1295
    %v1611 = vunpack.c.l.s4 1983009808
    %v1612 = vunpack.c.0.s8 %v1611
    %v1613 = vlaneseq
    %v1614 = vshrl.u32 %v1613, 7
    %v1615 = vsub.s32 %v1612, %v1614
    %v1616 = vrot.slane %v1608, %v1615
    %v1618 = vunpack.c.l.s4 1983009808
    %v1619 = vunpack.c.0.s8 %v1618
    %v1620 = vlaneseq
    %v1621 = vshrl.u32 %v1620, 7
    %v1622 = vsub.s32 %v1619, %v1621
    %v1623 = vrot.slane %v1609, %v1622
    %v1624 = vcombine.low %v1297, %v1301
    %v1625 = vcombine.high %v1297, %v1301
    %v1627 = vunpack.c.l.s4 1983009808
    %v1628 = vunpack.c.0.s8 %v1627
    %v1629 = vlaneseq
    %v1630 = vshrl.u32 %v1629, 7
    %v1631 = vsub.s32 %v1628, %v1630
    %v1632 = vrot.slane %v1624, %v1631
    %v1634 = vunpack.c.l.s4 1983009808
    %v1635 = vunpack.c.0.s8 %v1634
    %v1636 = vlaneseq
    %v1637 = vshrl.u32 %v1636, 7
    %v1638 = vsub.s32 %v1635, %v1637
    %v1639 = vrot.slane %v1625, %v1638
    %v1640 = vcombine.low %v1299, %v1303
    %v1641 = vcombine.high %v1299, %v1303
    %v1643 = vunpack.c.l.s4 1983009808
    %v1644 = vunpack.c.0.s8 %v1643
    %v1645 = vlaneseq
    %v1646 = vshrl.u32 %v1645, 7
    %v1647 = vsub.s32 %v1644, %v1646
    %v1648 = vrot.slane %v1640, %v1647
    %v1650 = vunpack.c.l.s4 1983009808
    %v1651 = vunpack.c.0.s8 %v1650
    %v1652 = vlaneseq
    %v1653 = vshrl.u32 %v1652, 7
    %v1654 = vsub.s32 %v1651, %v1653
    %v1655 = vrot.slane %v1641, %v1654
    %v1656 = vcombine.low %v1600, %v1616
    %v1657 = vcombine.high %v1600, %v1616
    %v1659 = vunpack.c.l.s4 1934713408
    %v1660 = vunpack.c.0.s8 %v1659
    %v1661 = vlaneseq
    %v1662 = vshrl.u32 %v1661, 7
    %v1663 = vsub.s32 %v1660, %v1662
    %v1664 = vrot.slane %v1656, %v1663
    %v1666 = vunpack.c.l.s4 1934713408
    %v1667 = vunpack.c.0.s8 %v1666
    %v1668 = vlaneseq
    %v1669 = vshrl.u32 %v1668, 7
    %v1670 = vsub.s32 %v1667, %v1669
    %v1671 = vrot.slane %v1657, %v1670
    %v1672 = vcombine.low %v1607, %v1623
    %v1673 = vcombine.high %v1607, %v1623
    %v1675 = vunpack.c.l.s4 1934713408
    %v1676 = vunpack.c.0.s8 %v1675
    %v1677 = vlaneseq
    %v1678 = vshrl.u32 %v1677, 7
    %v1679 = vsub.s32 %v1676, %v1678
    %v1680 = vrot.slane %v1672, %v1679
    %v1682 = vunpack.c.l.s4 1934713408
    %v1683 = vunpack.c.0.s8 %v1682
    %v1684 = vlaneseq
    %v1685 = vshrl.u32 %v1684, 7
    %v1686 = vsub.s32 %v1683, %v1685
    %v1687 = vrot.slane %v1673, %v1686
    %v1688 = vcombine.low %v1632, %v1648
    %v1689 = vcombine.high %v1632, %v1648
    %v1691 = vunpack.c.l.s4 1934713408
    %v1692 = vunpack.c.0.s8 %v1691
    %v1693 = vlaneseq
    %v1694 = vshrl.u32 %v1693, 7
    %v1695 = vsub.s32 %v1692, %v1694
    %v1696 = vrot.slane %v1688, %v1695
    %v1698 = vunpack.c.l.s4 1934713408
    %v1699 = vunpack.c.0.s8 %v1698
    %v1700 = vlaneseq
    %v1701 = vshrl.u32 %v1700, 7
    %v1702 = vsub.s32 %v1699, %v1701
    %v1703 = vrot.slane %v1689, %v1702
    %v1704 = vcombine.low %v1639, %v1655
    %v1705 = vcombine.high %v1639, %v1655
    %v1707 = vunpack.c.l.s4 1934713408
    %v1708 = vunpack.c.0.s8 %v1707
    %v1709 = vlaneseq
    %v1710 = vshrl.u32 %v1709, 7
    %v1711 = vsub.s32 %v1708, %v1710
    %v1712 = vrot.slane %v1704, %v1711
    %v1714 = vunpack.c.l.s4 1934713408
    %v1715 = vunpack.c.0.s8 %v1714
    %v1716 = vlaneseq
    %v1717 = vshrl.u32 %v1716, 7
    %v1718 = vsub.s32 %v1715, %v1717
    %v1719 = vrot.slane %v1705, %v1718
    %v1720 = vcombine.low %v1664, %v1696
    %v1721 = vcombine.high %v1664, %v1696
    %v1722 = vcombine.low %v1671, %v1703
    %v1723 = vcombine.high %v1671, %v1703
    %v1724 = vcombine.low %v1680, %v1712
    %v1725 = vcombine.high %v1680, %v1712
    %v1726 = vcombine.low %v1687, %v1719
    %v1727 = vcombine.high %v1687, %v1719
    %v1728 = vcombine.low %v1305, %v1309
    %v1729 = vcombine.high %v1305, %v1309
    %v1731 = vunpack.c.l.s4 1983009808
    %v1732 = vunpack.c.0.s8 %v1731
    %v1733 = vlaneseq
    %v1734 = vshrl.u32 %v1733, 7
    %v1735 = vsub.s32 %v1732, %v1734
    %v1736 = vrot.slane %v1728, %v1735
    %v1738 = vunpack.c.l.s4 1983009808
    %v1739 = vunpack.c.0.s8 %v1738
    %v1740 = vlaneseq
    %v1741 = vshrl.u32 %v1740, 7
    %v1742 = vsub.s32 %v1739, %v1741
    %v1743 = vrot.slane %v1729, %v1742
    %v1744 = vcombine.low %v1307, %v1311
    %v1745 = vcombine.high %v1307, %v1311
    %v1747 = vunpack.c.l.s4 1983009808
    %v1748 = vunpack.c.0.s8 %v1747
    %v1749 = vlaneseq
    %v1750 = vshrl.u32 %v1749, 7
    %v1751 = vsub.s32 %v1748, %v1750
    %v1752 = vrot.slane %v1744, %v1751
    %v1754 = vunpack.c.l.s4 1983009808
    %v1755 = vunpack.c.0.s8 %v1754
    %v1756 = vlaneseq
    %v1757 = vshrl.u32 %v1756, 7
    %v1758 = vsub.s32 %v1755, %v1757
    %v1759 = vrot.slane %v1745, %v1758
    %v1760 = vcombine.low %v1313, %v1317
    %v1761 = vcombine.high %v1313, %v1317
    %v1763 = vunpack.c.l.s4 1983009808
    %v1764 = vunpack.c.0.s8 %v1763
    %v1765 = vlaneseq
    %v1766 = vshrl.u32 %v1765, 7
    %v1767 = vsub.s32 %v1764, %v1766
    %v1768 = vrot.slane %v1760, %v1767
    %v1770 = vunpack.c.l.s4 1983009808
    %v1771 = vunpack.c.0.s8 %v1770
    %v1772 = vlaneseq
    %v1773 = vshrl.u32 %v1772, 7
    %v1774 = vsub.s32 %v1771, %v1773
    %v1775 = vrot.slane %v1761, %v1774
    %v1776 = vcombine.low %v1315, %v1319
    %v1777 = vcombine.high %v1315, %v1319
    %v1779 = vunpack.c.l.s4 1983009808
    %v1780 = vunpack.c.0.s8 %v1779
    %v1781 = vlaneseq
    %v1782 = vshrl.u32 %v1781, 7
    %v1783 = vsub.s32 %v1780, %v1782
    %v1784 = vrot.slane %v1776, %v1783
    %v1786 = vunpack.c.l.s4 1983009808
    %v1787 = vunpack.c.0.s8 %v1786
    %v1788 = vlaneseq
    %v1789 = vshrl.u32 %v1788, 7
    %v1790 = vsub.s32 %v1787, %v1789
    %v1791 = vrot.slane %v1777, %v1790
    %v1792 = vcombine.low %v1736, %v1752
    %v1793 = vcombine.high %v1736, %v1752
    %v1795 = vunpack.c.l.s4 1934713408
    %v1796 = vunpack.c.0.s8 %v1795
    %v1797 = vlaneseq
    %v1798 = vshrl.u32 %v1797, 7
    %v1799 = vsub.s32 %v1796, %v1798
    %v1800 = vrot.slane %v1792, %v1799
    %v1802 = vunpack.c.l.s4 1934713408
    %v1803 = vunpack.c.0.s8 %v1802
    %v1804 = vlaneseq
    %v1805 = vshrl.u32 %v1804, 7
    %v1806 = vsub.s32 %v1803, %v1805
    %v1807 = vrot.slane %v1793, %v1806
    %v1808 = vcombine.low %v1743, %v1759
    %v1809 = vcombine.high %v1743, %v1759
    %v1811 = vunpack.c.l.s4 1934713408
    %v1812 = vunpack.c.0.s8 %v1811
    %v1813 = vlaneseq
    %v1814 = vshrl.u32 %v1813, 7
    %v1815 = vsub.s32 %v1812, %v1814
    %v1816 = vrot.slane %v1808, %v1815
    %v1818 = vunpack.c.l.s4 1934713408
    %v1819 = vunpack.c.0.s8 %v1818
    %v1820 = vlaneseq
    %v1821 = vshrl.u32 %v1820, 7
    %v1822 = vsub.s32 %v1819, %v1821
    %v1823 = vrot.slane %v1809, %v1822
    %v1824 = vcombine.low %v1768, %v1784
    %v1825 = vcombine.high %v1768, %v1784
    %v1827 = vunpack.c.l.s4 1934713408
    %v1828 = vunpack.c.0.s8 %v1827
    %v1829 = vlaneseq
    %v1830 = vshrl.u32 %v1829, 7
    %v1831 = vsub.s32 %v1828, %v1830
    %v1832 = vrot.slane %v1824, %v1831
    %v1834 = vunpack.c.l.s4 1934713408
    %v1835 = vunpack.c.0.s8 %v1834
    %v1836 = vlaneseq
    %v1837 = vshrl.u32 %v1836, 7
    %v1838 = vsub.s32 %v1835, %v1837
    %v1839 = vrot.slane %v1825, %v1838
    %v1840 = vcombine.low %v1775, %v1791
    %v1841 = vcombine.high %v1775, %v1791
    %v1843 = vunpack.c.l.s4 1934713408
    %v1844 = vunpack.c.0.s8 %v1843
    %v1845 = vlaneseq
    %v1846 = vshrl.u32 %v1845, 7
    %v1847 = vsub.s32 %v1844, %v1846
    %v1848 = vrot.slane %v1840, %v1847
    %v1850 = vunpack.c.l.s4 1934713408
    %v1851 = vunpack.c.0.s8 %v1850
    %v1852 = vlaneseq
    %v1853 = vshrl.u32 %v1852, 7
    %v1854 = vsub.s32 %v1851, %v1853
    %v1855 = vrot.slane %v1841, %v1854
    %v1856 = vcombine.low %v1800, %v1832
    %v1857 = vcombine.high %v1800, %v1832
    %v1858 = vcombine.low %v1807, %v1839
    %v1859 = vcombine.high %v1807, %v1839
    %v1860 = vcombine.low %v1816, %v1848
    %v1861 = vcombine.high %v1816, %v1848
    %v1862 = vcombine.low %v1823, %v1855
    %v1863 = vcombine.high %v1823, %v1855
    %1866 = vrot.lane.b32.xlu0 %v1449, 64
    %v1867 = vpop.permute.xlu0 %1866
    %1868 = vrot.lane.b32.xlu0 %v1585, 64
    %v1869 = vpop.permute.xlu0 %1868
    %1874 = vrot.lane.b32.xlu0 %v1451, 64
    %v1875 = vpop.permute.xlu0 %1874
    %1876 = vrot.lane.b32.xlu0 %v1587, 64
    %v1877 = vpop.permute.xlu0 %1876
    %1882 = vrot.lane.b32.xlu0 %v1453, 64
    %v1883 = vpop.permute.xlu0 %1882
    %1884 = vrot.lane.b32.xlu0 %v1589, 64
    %v1885 = vpop.permute.xlu0 %1884
    %1890 = vrot.lane.b32.xlu0 %v1455, 64
    %v1891 = vpop.permute.xlu0 %1890
    %1892 = vrot.lane.b32.xlu0 %v1591, 64
    %v1893 = vpop.permute.xlu0 %1892
    %1898 = vrot.lane.b32.xlu0 %v1721, 64
    %v1899 = vpop.permute.xlu0 %1898
    %1900 = vrot.lane.b32.xlu0 %v1857, 64
    %v1901 = vpop.permute.xlu0 %1900
    %1906 = vrot.lane.b32.xlu0 %v1723, 64
    %v1907 = vpop.permute.xlu0 %1906
    %1908 = vrot.lane.b32.xlu0 %v1859, 64
    %v1909 = vpop.permute.xlu0 %1908
    %1914 = vrot.lane.b32.xlu0 %v1725, 64
    %v1915 = vpop.permute.xlu0 %1914
    %1916 = vrot.lane.b32.xlu0 %v1861, 64
    %v1917 = vpop.permute.xlu0 %1916
    %1922 = vrot.lane.b32.xlu0 %v1727, 64
    %v1923 = vpop.permute.xlu0 %1922
    %1924 = vrot.lane.b32.xlu0 %v1863, 64
    %v1925 = vpop.permute.xlu0 %1924
    %vm1928 = vcmask 523264
    %v1929 = vsel %vm1928, %v1448, %v1867
    %v1930 = vsel %vm1928, %v1584, %v1869
    %v1931 = vsel %vm1928, %v1450, %v1875
    %v1932 = vsel %vm1928, %v1586, %v1877
    %v1933 = vsel %vm1928, %v1452, %v1883
    %v1934 = vsel %vm1928, %v1588, %v1885
    %v1935 = vsel %vm1928, %v1454, %v1891
    %v1936 = vsel %vm1928, %v1590, %v1893
    %v1937 = vsel %vm1928, %v1720, %v1899
    %v1938 = vsel %vm1928, %v1856, %v1901
    %v1939 = vsel %vm1928, %v1722, %v1907
    %v1940 = vsel %vm1928, %v1858, %v1909
    %v1941 = vsel %vm1928, %v1724, %v1915
    %v1942 = vsel %vm1928, %v1860, %v1917
    %v1943 = vsel %vm1928, %v1726, %v1923
    %v1944 = vsel %vm1928, %v1862, %v1925
    %1945 = vst [vmem:[#allocation8] sm:$0xff] %v1929
    %1946 = vst [vmem:[#allocation8 + $0x8] sm:$0xff] %v1931
    %1947 = vst [vmem:[#allocation8 + $0x10] sm:$0xff] %v1933
    %1948 = vst [vmem:[#allocation8 + $0x18] sm:$0xff] %v1935
    %1949 = vst [vmem:[#allocation8 + $0x20] sm:$0xff] %v1937
    %1950 = vst [vmem:[#allocation8 + $0x28] sm:$0xff] %v1939
    %1951 = vst [vmem:[#allocation8 + $0x30] sm:$0xff] %v1941
    %1952 = vst [vmem:[#allocation8 + $0x38] sm:$0xff] %v1943
    %1953 = vst [vmem:[#allocation8 + $0x40] sm:$0xff] %v1930
    %1954 = vst [vmem:[#allocation8 + $0x48] sm:$0xff] %v1932
    %1955 = vst [vmem:[#allocation8 + $0x50] sm:$0xff] %v1934
    %1956 = vst [vmem:[#allocation8 + $0x58] sm:$0xff] %v1936
    %1957 = vst [vmem:[#allocation8 + $0x60] sm:$0xff] %v1938
    %1958 = vst [vmem:[#allocation8 + $0x68] sm:$0xff] %v1940
    %1959 = vst [vmem:[#allocation8 + $0x70] sm:$0xff] %v1942
    %1960 = vst [vmem:[#allocation8 + $0x78] sm:$0xff] %v1944
    // Predicated region
    $region30: #{tpu_custom_call.1} parent=1 // pred_check
      _
    $region31: #{tpu_custom_call.1} parent=1 // pred_check_branch
      %1962 = sbr.rel (0) target = $region33
    $region32: #{tpu_custom_call.1} parent=1 // pred_region
      %s1964 = ssub.s32 2048, 2048
      %1965 = vsyncadd [#allocation4], %s1964
      %s1966 = sshll.u32 [#allocation8], 4
      %s1967 = int_to_ptr.vmem [resolvable:$true] %s1966
      %1972 = dma.vmem_to_hbm [thread:$0]  %s1967, 2048, %s4, [#allocation4], 1024, 1024, 64
    $region33: #{tpu_custom_call.1} parent=1 // pred_fallthru
      _
    // Predicated region
    $region34: #{tpu_custom_call.1} parent=1 // pred_check
      _
    $region35: #{tpu_custom_call.1} parent=1 // pred_check_branch
      %1974 = sbr.rel (0) target = $region37
    $region36: #{tpu_custom_call.1} parent=1 // pred_region
      %1975 = dma.done [#allocation4], 2048
    $region37: #{tpu_custom_call.1} parent=1 // pred_fallthru
      _
    %1976 = vsyncpa [#allocation3], 1
    %1977 = vsyncpa [#allocation6], 1
    %1978 = vsyncpa [#allocation4], 1

</llo_original>
